<compile_context>
chip_gen: v7x
topology: tpu7x:2x2x1
jax: 0.10.0
libtpu: 0.0.40
codegen_flags: <defaults>
</compile_context>

<pallas_src>
import numpy as np
import jax
import jax.numpy as jnp
from jax import lax
from jax.experimental import pallas as pl
from jax.experimental.pallas import tpu as pltpu


# ---------------------------------------------------------------------------
# Fused kernel: per grid step = T_blk timesteps.
#   parallel part : z = [x|nb] @ [[Wrx Wux Wcx W1 0],[0 0 0 0 W2]] + b
#                   g = sigmoid(relu(z_l1) @ Wg1 + relu(z_l2) @ Wg2 + bg)
#   serial part   : ru    = sigmoid(pre_ru + state @ [Wrh|Wuh])
#                   c     = tanh(pre_c + (r*state) @ Wch)
#                   new_h = u*state + (1-u)*c*g
#   epilogue      : one lane-dense (B_pad, T_blk*H) store.
# ---------------------------------------------------------------------------
def _make_fused_kernel(E, H, T_blk, B_pad):
    def kernel(x_ref, wx_ref, bx_ref, wg1_ref, wg2_ref, bg_ref,
               wruh_ref, wch_ref, h0_ref, out_ref, hf_ref, state_scr):
        t = pl.program_id(0)

        @pl.when(t == 0)
        def _():
            state_scr[...] = h0_ref[...]

        wx = wx_ref[...]            # (2E, 5H)  (f32 or bf16)
        bx = bx_ref[...]            # (1, 5H)   f32
        wg1 = wg1_ref[...]          # (H, H)
        wg2 = wg2_ref[...]          # (H, H)
        bg = bg_ref[...]            # (1, H)    f32
        w_ruh = wruh_ref[...]       # (H, 2H)  [Wrh | Wuh]
        wch = wch_ref[...]          # (H, H)

        # ---- input-only projections for the whole block (one MXU push) ----
        xb = x_ref[...]                                   # (T_blk*B_pad, 2E), t-major
        z = jnp.dot(xb.astype(wx.dtype), wx,
                    preferred_element_type=jnp.float32) + bx          # (T*B, 5H)
        sem = jax.nn.relu(z[:, 3 * H:4 * H])
        nbe = jax.nn.relu(z[:, 4 * H:5 * H])
        g = jax.nn.sigmoid(
            jnp.dot(sem.astype(wg1.dtype), wg1, preferred_element_type=jnp.float32)
            + jnp.dot(nbe.astype(wg2.dtype), wg2, preferred_element_type=jnp.float32)
            + bg)                                                      # (T*B, H)

        # ---- sequential recurrence over the T_blk timesteps ---------------
        # TODO(synk): for large T_blk switch to lax.fori_loop(..., unroll=True)
        # with dynamic_update_slice to bound vreg live ranges; at T_blk<=8 the
        # static unroll + single lane-concat store is cheaper.
        state = state_scr[...]                             # (B_pad, H) f32
        hs = []
        for tt in range(T_blk):                            # static unroll
            row0 = tt * B_pad
            pre = z[row0:row0 + B_pad]                     # (B_pad, 5H), static slice
            g_t = g[row0:row0 + B_pad]                     # (B_pad, H)

            su = jnp.dot(state.astype(w_ruh.dtype), w_ruh,
                         preferred_element_type=jnp.float32)           # (B_pad, 2H)
            ru = jax.nn.sigmoid(pre[:, :2 * H] + su)       # fused r|u sigmoid
            r = ru[:, :H]
            u = ru[:, H:]
            c = jnp.tanh(pre[:, 2 * H:3 * H]
                         + jnp.dot((r * state).astype(wch.dtype), wch,
                                   preferred_element_type=jnp.float32))
            new_h = u * state + (1.0 - u) * c * g_t
            hs.append(new_h)
            state = new_h

        state_scr[...] = state
        # one lane-dense (B_pad, T_blk*H) store per grid step
        out_ref[...] = jnp.concatenate(hs, axis=-1).astype(out_ref.dtype)

        @pl.when(t == pl.num_programs(0) - 1)
        def _():
            hf_ref[...] = state.astype(hf_ref.dtype)

    return kernel


def _pick_tblk(L, cap=128):
    """Timesteps per grid iteration: must divide L and be a multiple of 8
    (or equal L) so the time-major x block satisfies the (8, 128) rule."""
    for t in range(min(L, cap), 0, -1):
        if L % t == 0 and (t % 8 == 0 or t == L):
            return t
    return L


def _full_spec(arr):
    # Grid-invariant full-array spec.
    # TODO(synk): pipeline_mode=pl.Buffered(1) to single-buffer these on v7x.
    nd = arr.ndim
    return pl.BlockSpec(arr.shape, lambda t, _nd=nd: (0,) * _nd)


def modified_gru_pallas(x, params, h0=None, mxu_dtype=jnp.float32):
    """x: (B, L, input_size) f32.  Returns (outputs (B, L, H), state (B, H)).

    mxu_dtype: dtype for MXU operands only (weights + dot LHS). Use
    jnp.bfloat16 on v6e/v7x for production sizes (relax test tolerance);
    all gating/elementwise math stays f32 (required on v5e)."""
    B, L, I = x.shape
    E = I // 2
    H = params["br"].shape[-1]
    x = x.astype(jnp.float32)
    if h0 is None:
        h0 = jnp.zeros((B, H), jnp.float32)
    h0 = h0.astype(jnp.float32)

    # ---- pad batch to >=8 sublanes (vreg / MXU-M fill); sliced off below ----
    B_pad = max(8, -(-B // 8) * 8)
    pad_b = B_pad - B
    if pad_b:
        x = jnp.pad(x, ((0, pad_b), (0, 0), (0, 0)))
        h0 = jnp.pad(h0, ((0, pad_b), (0, 0)))

    # time-major, batch-minor flat view so the kernel's block is directly the
    # (T_blk*B_pad, 2E) matmul LHS (wrapper transpose = layout plumbing only)
    x_flat = jnp.transpose(x, (1, 0, 2)).reshape(L * B_pad, 2 * E)

    # ---- host-side weight fusion (lane-dense matmul N dims) -----------------
    # [inp | nb] @ [[Wrx Wux Wcx W1 0], [0 0 0 0 W2]]  -> (2E, 5H)
    wx_big = jnp.concatenate(
        [jnp.concatenate([params["wrx"], params["wux"], params["wcx"],
                          params["w1"], jnp.zeros((E, H), jnp.float32)], axis=1),
         jnp.concatenate([jnp.zeros((E, 4 * H), jnp.float32),
                          params["w2"]], axis=1)],
        axis=0).astype(mxu_dtype)
    bx_big = jnp.concatenate([params["br"], params["bu"], params["bc"],
                              params["b1"], params["b2"]], axis=1)      # (1, 5H) f32
    w_ruh = jnp.concatenate([params["wrh"], params["wuh"]],
                            axis=1).astype(mxu_dtype)                   # (H, 2H)
    wch = params["wch"].astype(mxu_dtype)
    wg1 = params["wg1"].astype(mxu_dtype)
    wg2 = params["wg2"].astype(mxu_dtype)
    bg = params["bg"]                                                   # (1, H) f32

    T_blk = _pick_tblk(L)
    num_blk = L // T_blk

    out_flat, hf = pl.pallas_call(
        _make_fused_kernel(E, H, T_blk, B_pad),
        out_shape=(jax.ShapeDtypeStruct((B_pad, L * H), jnp.float32),
                   jax.ShapeDtypeStruct((B_pad, H), jnp.float32)),
        grid_spec=pltpu.PrefetchScalarGridSpec(
            num_scalar_prefetch=0,
            grid=(num_blk,),
            in_specs=[
                pl.BlockSpec((T_blk * B_pad, 2 * E), lambda t: (t, 0)),
                _full_spec(wx_big), _full_spec(bx_big),
                _full_spec(wg1), _full_spec(wg2), _full_spec(bg),
                _full_spec(w_ruh), _full_spec(wch),
                pl.BlockSpec((B_pad, H), lambda t: (0, 0)),
            ],
            out_specs=[
                pl.BlockSpec((B_pad, T_blk * H), lambda t: (0, t)),
                pl.BlockSpec((B_pad, H), lambda t: (0, 0)),
            ],
            scratch_shapes=[pltpu.VMEM((B_pad, H), jnp.float32)],
        ),
        compiler_params=pltpu.CompilerParams(
            dimension_semantics=("arbitrary",)),   # sequential recurrence
    )(x_flat, wx_big, bx_big, wg1, wg2, bg, w_ruh, wch, h0)

    out = out_flat.reshape(B_pad, L, H)[:B]
    return out, hf[:B]


def init_params(key, input_size, hidden_size):
    """Deterministic synthetic parameters (shapes from ModifiedGRUCell.__init__).
    Linear weights stored pre-transposed (in_features, out_features) and split
    per concatenated operand."""
    E, H = input_size // 2, hidden_size
    keys = jax.random.split(key, 16)
    scale = 0.1

    def w(k, shape):
        return jax.random.uniform(k, shape, jnp.float32, -1.0, 1.0) * scale

    return {
        # reset_linear: (H, E+H) -> split/transpose
        "wrx": w(keys[0], (E, H)), "wrh": w(keys[1], (H, H)), "br": w(keys[2], (1, H)),
        # update_linear
        "wux": w(keys[3], (E, H)), "wuh": w(keys[4], (H, H)), "bu": w(keys[5], (1, H)),
        # candidate_linear
        "wcx": w(keys[6], (E, H)), "wch": w(keys[7], (H, H)), "bc": w(keys[8], (1, H)),
        # layer1 / layer2
        "w1": w(keys[9], (E, H)), "b1": w(keys[10], (1, H)),
        "w2": w(keys[11], (E, H)), "b2": w(keys[12], (1, H)),
        # new_gate: (H, 2H) -> split/transpose
        "wg1": w(keys[13], (H, H)), "wg2": w(keys[14], (H, H)), "bg": w(keys[15], (1, H)),
        # TODO(synk): tmp1, tmp2, new_r_gate exist in __init__ but are unused in forward.
    }


def modified_gru_ref(x, params, h0=None):
    """Pure-JAX reference matching the PyTorch forward."""
    B, L, I = x.shape
    E = I // 2
    H = params["br"].shape[-1]
    if h0 is None:
        h0 = jnp.zeros((B, H), jnp.float32)

    def cell(state, xt):
        inp, nb = xt[:, :E], xt[:, E:]
        r = jax.nn.sigmoid(inp @ params["wrx"] + state @ params["wrh"] + params["br"])
        u = jax.nn.sigmoid(inp @ params["wux"] + state @ params["wuh"] + params["bu"])
        c = jnp.tanh(inp @ params["wcx"] + (r * state) @ params["wch"] + params["bc"])
        sem = jax.nn.relu(inp @ params["w1"] + params["b1"])
        nbe = jax.nn.relu(nb @ params["w2"] + params["b2"])
        g = jax.nn.sigmoid(sem @ params["wg1"] + nbe @ params["wg2"] + params["bg"])
        new_h = u * state + (1.0 - u) * c * g
        return new_h, new_h

    state, outs = lax.scan(cell, h0, jnp.transpose(x, (1, 0, 2)))
    return jnp.transpose(outs, (1, 0, 2)), state


if __name__ == "__main__":
    B, L, INPUT_SIZE, HIDDEN = 2, 8, 64, 32   # embedding_size E = 32

    key = jax.random.PRNGKey(0)
    kx, kp = jax.random.split(key)
    x = jax.random.normal(kx, (B, L, INPUT_SIZE), jnp.float32)
    params = init_params(kp, INPUT_SIZE, HIDDEN)

    out, state = modified_gru_pallas(x, params)
    out, state = jax.block_until_ready(out), jax.block_until_ready(state)

    out_ref, state_ref = modified_gru_ref(x, params)
    assert out.shape == (B, L, HIDDEN) and state.shape == (B, HIDDEN)
    np.testing.assert_allclose(np.asarray(out), np.asarray(out_ref), atol=1e-5, rtol=1e-5)
    np.testing.assert_allclose(np.asarray(state), np.asarray(state_ref), atol=1e-5, rtol=1e-5)

    print("KERNEL_OK")
</pallas_src>

<mosaic_0001>
module attributes {stable_mosaic.version = 11 : i64} {
  func.func @kernel(%arg0: i32, %arg1: memref<64x64xf32, #tpu.memory_space<vmem>>, %arg2: memref<64x160xf32, #tpu.memory_space<vmem>>, %arg3: memref<1x160xf32, #tpu.memory_space<vmem>>, %arg4: memref<32x32xf32, #tpu.memory_space<vmem>>, %arg5: memref<32x32xf32, #tpu.memory_space<vmem>>, %arg6: memref<1x32xf32, #tpu.memory_space<vmem>>, %arg7: memref<32x64xf32, #tpu.memory_space<vmem>>, %arg8: memref<32x32xf32, #tpu.memory_space<vmem>>, %arg9: memref<8x32xf32, #tpu.memory_space<vmem>>, %arg10: memref<8x256xf32, #tpu.memory_space<vmem>>, %arg11: memref<8x32xf32, #tpu.memory_space<vmem>>, %arg12: memref<8x32xf32, #tpu.memory_space<vmem>>) attributes {dimension_semantics = [#tpu.dimension_semantics<arbitrary>], iteration_bounds = array<i64: 1>, scalar_prefetch = 0 : i64, scratch_operands = 1 : i64, tpu.core_type = #tpu.core_type<tc>, window_params = [{transform_indices = @transform_0, window_bounds = array<i64: 64, 64>}, {pipeline_mode = #tpu.pipeline_mode<synchronous>, transform_indices = @transform_1, window_bounds = array<i64: 64, 160>}, {pipeline_mode = #tpu.pipeline_mode<synchronous>, transform_indices = @transform_2, window_bounds = array<i64: 1, 160>}, {pipeline_mode = #tpu.pipeline_mode<synchronous>, transform_indices = @transform_3, window_bounds = array<i64: 32, 32>}, {pipeline_mode = #tpu.pipeline_mode<synchronous>, transform_indices = @transform_4, window_bounds = array<i64: 32, 32>}, {pipeline_mode = #tpu.pipeline_mode<synchronous>, transform_indices = @transform_5, window_bounds = array<i64: 1, 32>}, {pipeline_mode = #tpu.pipeline_mode<synchronous>, transform_indices = @transform_6, window_bounds = array<i64: 32, 64>}, {pipeline_mode = #tpu.pipeline_mode<synchronous>, transform_indices = @transform_7, window_bounds = array<i64: 32, 32>}, {pipeline_mode = #tpu.pipeline_mode<synchronous>, transform_indices = @transform_8, window_bounds = array<i64: 8, 32>}, {transform_indices = @transform_9, window_bounds = array<i64: 8, 256>}, {pipeline_mode = #tpu.pipeline_mode<synchronous>, transform_indices = @transform_10, window_bounds = array<i64: 8, 32>}]} {
    %c0_i32 = arith.constant 0 : i32
    %0 = arith.cmpi eq, %arg0, %c0_i32 : i32
    %1 = arith.extui %0 : i1 to i32
    %c0_i32_0 = arith.constant 0 : i32
    %2 = arith.cmpi ne, %1, %c0_i32_0 : i32
    scf.if %2 {
      %c0_61 = arith.constant 0 : index
      %c0_62 = arith.constant 0 : index
      %221 = vector.load %arg9[%c0_61, %c0_62] : memref<8x32xf32, #tpu.memory_space<vmem>>, vector<8x32xf32>
      %c0_63 = arith.constant 0 : index
      %c0_64 = arith.constant 0 : index
      %222 = vector.load %arg12[%c0_63, %c0_64] : memref<8x32xf32, #tpu.memory_space<vmem>>, vector<8x32xf32>
      tpu.vector_store %arg12[%c0_63, %c0_64], %221 {strides = array<i32>} : memref<8x32xf32, #tpu.memory_space<vmem>>, vector<8x32xf32>,
    } else {
    }
    %c0 = arith.constant 0 : index
    %c0_1 = arith.constant 0 : index
    %3 = vector.load %arg2[%c0, %c0_1] : memref<64x160xf32, #tpu.memory_space<vmem>>, vector<64x160xf32>
    %c0_2 = arith.constant 0 : index
    %c0_3 = arith.constant 0 : index
    %4 = vector.load %arg3[%c0_2, %c0_3] : memref<1x160xf32, #tpu.memory_space<vmem>>, vector<1x160xf32>
    %c0_4 = arith.constant 0 : index
    %c0_5 = arith.constant 0 : index
    %5 = vector.load %arg4[%c0_4, %c0_5] : memref<32x32xf32, #tpu.memory_space<vmem>>, vector<32x32xf32>
    %c0_6 = arith.constant 0 : index
    %c0_7 = arith.constant 0 : index
    %6 = vector.load %arg5[%c0_6, %c0_7] : memref<32x32xf32, #tpu.memory_space<vmem>>, vector<32x32xf32>
    %c0_8 = arith.constant 0 : index
    %c0_9 = arith.constant 0 : index
    %7 = vector.load %arg6[%c0_8, %c0_9] : memref<1x32xf32, #tpu.memory_space<vmem>>, vector<1x32xf32>
    %c0_10 = arith.constant 0 : index
    %c0_11 = arith.constant 0 : index
    %8 = vector.load %arg7[%c0_10, %c0_11] : memref<32x64xf32, #tpu.memory_space<vmem>>, vector<32x64xf32>
    %c0_12 = arith.constant 0 : index
    %c0_13 = arith.constant 0 : index
    %9 = vector.load %arg8[%c0_12, %c0_13] : memref<32x32xf32, #tpu.memory_space<vmem>>, vector<32x32xf32>
    %c0_14 = arith.constant 0 : index
    %c0_15 = arith.constant 0 : index
    %10 = vector.load %arg1[%c0_14, %c0_15] : memref<64x64xf32, #tpu.memory_space<vmem>>, vector<64x64xf32>
    %cst = arith.constant dense<0.000000e+00> : vector<64x160xf32>
    %11 = tpu.matmul %10, %3, %cst {dimension_numbers = #tpu.dot_dimension_numbers<[1], [0], [0], [1], [0, 0, 1, 1], [], []>} : vector<64x64xf32>, vector<64x160xf32>, vector<64x160xf32> -> vector<64x160xf32>
    %12 = vector.broadcast %4 : vector<1x160xf32> to vector<64x160xf32>
    %13 = arith.addf %11, %12 : vector<64x160xf32>
    %14 = vector.extract_strided_slice %13 {offsets = [0, 96], sizes = [64, 32], strides = [1, 1]} : vector<64x160xf32> to vector<64x32xf32>
    %cst_16 = arith.constant 0.000000e+00 : f32
    %15 = vector.broadcast %cst_16 : f32 to vector<64x32xf32>
    %16 = arith.maximumf %14, %15 : vector<64x32xf32>
    %17 = vector.extract_strided_slice %13 {offsets = [0, 128], sizes = [64, 32], strides = [1, 1]} : vector<64x160xf32> to vector<64x32xf32>
    %cst_17 = arith.constant 0.000000e+00 : f32
    %18 = vector.broadcast %cst_17 : f32 to vector<64x32xf32>
    %19 = arith.maximumf %17, %18 : vector<64x32xf32>
    %cst_18 = arith.constant dense<0.000000e+00> : vector<64x32xf32>
    %20 = tpu.matmul %16, %5, %cst_18 {dimension_numbers = #tpu.dot_dimension_numbers<[1], [0], [0], [1], [0, 0, 1, 1], [], []>} : vector<64x32xf32>, vector<32x32xf32>, vector<64x32xf32> -> vector<64x32xf32>
    %cst_19 = arith.constant dense<0.000000e+00> : vector<64x32xf32>
    %21 = tpu.matmul %19, %6, %cst_19 {dimension_numbers = #tpu.dot_dimension_numbers<[1], [0], [0], [1], [0, 0, 1, 1], [], []>} : vector<64x32xf32>, vector<32x32xf32>, vector<64x32xf32> -> vector<64x32xf32>
    %22 = arith.addf %20, %21 : vector<64x32xf32>
    %23 = vector.broadcast %7 : vector<1x32xf32> to vector<64x32xf32>
    %24 = arith.addf %22, %23 : vector<64x32xf32>
    %25 = arith.negf %24 : vector<64x32xf32>
    %26 = math.exp %25 : vector<64x32xf32>
    %cst_20 = arith.constant 1.000000e+00 : f32
    %27 = vector.broadcast %cst_20 : f32 to vector<64x32xf32>
    %28 = arith.addf %27, %26 : vector<64x32xf32>
    %29 = arith.divf %27, %28 : vector<64x32xf32>
    %c0_21 = arith.constant 0 : index
    %c0_22 = arith.constant 0 : index
    %30 = vector.load %arg12[%c0_21, %c0_22] : memref<8x32xf32, #tpu.memory_space<vmem>>, vector<8x32xf32>
    %31 = vector.extract_strided_slice %13 {offsets = [0, 0], sizes = [8, 160], strides = [1, 1]} : vector<64x160xf32> to vector<8x160xf32>
    %32 = vector.extract_strided_slice %29 {offsets = [0, 0], sizes = [8, 32], strides = [1, 1]} : vector<64x32xf32> to vector<8x32xf32>
    %cst_23 = arith.constant dense<0.000000e+00> : vector<8x64xf32>
    %33 = tpu.matmul %30, %8, %cst_23 {dimension_numbers = #tpu.dot_dimension_numbers<[1], [0], [0], [1], [0, 0, 1, 1], [], []>} : vector<8x32xf32>, vector<32x64xf32>, vector<8x64xf32> -> vector<8x64xf32>
    %34 = vector.extract_strided_slice %31 {offsets = [0, 0], sizes = [8, 64], strides = [1, 1]} : vector<8x160xf32> to vector<8x64xf32>
    %35 = arith.addf %34, %33 : vector<8x64xf32>
    %36 = arith.negf %35 : vector<8x64xf32>
    %37 = math.exp %36 : vector<8x64xf32>
    %cst_24 = arith.constant 1.000000e+00 : f32
    %38 = vector.broadcast %cst_24 : f32 to vector<8x64xf32>
    %39 = arith.addf %38, %37 : vector<8x64xf32>
    %40 = arith.divf %38, %39 : vector<8x64xf32>
    %41 = vector.extract_strided_slice %40 {offsets = [0, 0], sizes = [8, 32], strides = [1, 1]} : vector<8x64xf32> to vector<8x32xf32>
    %42 = vector.extract_strided_slice %40 {offsets = [0, 32], sizes = [8, 32], strides = [1, 1]} : vector<8x64xf32> to vector<8x32xf32>
    %43 = vector.extract_strided_slice %31 {offsets = [0, 64], sizes = [8, 32], strides = [1, 1]} : vector<8x160xf32> to vector<8x32xf32>
    %44 = arith.mulf %41, %30 : vector<8x32xf32>
    %cst_25 = arith.constant dense<0.000000e+00> : vector<8x32xf32>
    %45 = tpu.matmul %44, %9, %cst_25 {dimension_numbers = #tpu.dot_dimension_numbers<[1], [0], [0], [1], [0, 0, 1, 1], [], []>} : vector<8x32xf32>, vector<32x32xf32>, vector<8x32xf32> -> vector<8x32xf32>
    %46 = arith.addf %43, %45 : vector<8x32xf32>
    %47 = math.tanh %46 : vector<8x32xf32>
    %48 = arith.mulf %42, %30 : vector<8x32xf32>
    %cst_26 = arith.constant 1.000000e+00 : f32
    %49 = vector.broadcast %cst_26 : f32 to vector<8x32xf32>
    %50 = arith.subf %49, %42 : vector<8x32xf32>
    %51 = arith.mulf %50, %47 : vector<8x32xf32>
    %52 = arith.mulf %51, %32 : vector<8x32xf32>
    %53 = arith.addf %48, %52 : vector<8x32xf32>
    %54 = vector.extract_strided_slice %13 {offsets = [8, 0], sizes = [8, 160], strides = [1, 1]} : vector<64x160xf32> to vector<8x160xf32>
    %55 = vector.extract_strided_slice %29 {offsets = [8, 0], sizes = [8, 32], strides = [1, 1]} : vector<64x32xf32> to vector<8x32xf32>
    %cst_27 = arith.constant dense<0.000000e+00> : vector<8x64xf32>
    %56 = tpu.matmul %53, %8, %cst_27 {dimension_numbers = #tpu.dot_dimension_numbers<[1], [0], [0], [1], [0, 0, 1, 1], [], []>} : vector<8x32xf32>, vector<32x64xf32>, vector<8x64xf32> -> vector<8x64xf32>
    %57 = vector.extract_strided_slice %54 {offsets = [0, 0], sizes = [8, 64], strides = [1, 1]} : vector<8x160xf32> to vector<8x64xf32>
    %58 = arith.addf %57, %56 : vector<8x64xf32>
    %59 = arith.negf %58 : vector<8x64xf32>
    %60 = math.exp %59 : vector<8x64xf32>
    %cst_28 = arith.constant 1.000000e+00 : f32
    %61 = vector.broadcast %cst_28 : f32 to vector<8x64xf32>
    %62 = arith.addf %61, %60 : vector<8x64xf32>
    %63 = arith.divf %61, %62 : vector<8x64xf32>
    %64 = vector.extract_strided_slice %63 {offsets = [0, 0], sizes = [8, 32], strides = [1, 1]} : vector<8x64xf32> to vector<8x32xf32>
    %65 = vector.extract_strided_slice %63 {offsets = [0, 32], sizes = [8, 32], strides = [1, 1]} : vector<8x64xf32> to vector<8x32xf32>
    %66 = vector.extract_strided_slice %54 {offsets = [0, 64], sizes = [8, 32], strides = [1, 1]} : vector<8x160xf32> to vector<8x32xf32>
    %67 = arith.mulf %64, %53 : vector<8x32xf32>
    %cst_29 = arith.constant dense<0.000000e+00> : vector<8x32xf32>
    %68 = tpu.matmul %67, %9, %cst_29 {dimension_numbers = #tpu.dot_dimension_numbers<[1], [0], [0], [1], [0, 0, 1, 1], [], []>} : vector<8x32xf32>, vector<32x32xf32>, vector<8x32xf32> -> vector<8x32xf32>
    %69 = arith.addf %66, %68 : vector<8x32xf32>
    %70 = math.tanh %69 : vector<8x32xf32>
    %71 = arith.mulf %65, %53 : vector<8x32xf32>
    %cst_30 = arith.constant 1.000000e+00 : f32
    %72 = vector.broadcast %cst_30 : f32 to vector<8x32xf32>
    %73 = arith.subf %72, %65 : vector<8x32xf32>
    %74 = arith.mulf %73, %70 : vector<8x32xf32>
    %75 = arith.mulf %74, %55 : vector<8x32xf32>
    %76 = arith.addf %71, %75 : vector<8x32xf32>
    %77 = vector.extract_strided_slice %13 {offsets = [16, 0], sizes = [8, 160], strides = [1, 1]} : vector<64x160xf32> to vector<8x160xf32>
    %78 = vector.extract_strided_slice %29 {offsets = [16, 0], sizes = [8, 32], strides = [1, 1]} : vector<64x32xf32> to vector<8x32xf32>
    %cst_31 = arith.constant dense<0.000000e+00> : vector<8x64xf32>
    %79 = tpu.matmul %76, %8, %cst_31 {dimension_numbers = #tpu.dot_dimension_numbers<[1], [0], [0], [1], [0, 0, 1, 1], [], []>} : vector<8x32xf32>, vector<32x64xf32>, vector<8x64xf32> -> vector<8x64xf32>
    %80 = vector.extract_strided_slice %77 {offsets = [0, 0], sizes = [8, 64], strides = [1, 1]} : vector<8x160xf32> to vector<8x64xf32>
    %81 = arith.addf %80, %79 : vector<8x64xf32>
    %82 = arith.negf %81 : vector<8x64xf32>
    %83 = math.exp %82 : vector<8x64xf32>
    %cst_32 = arith.constant 1.000000e+00 : f32
    %84 = vector.broadcast %cst_32 : f32 to vector<8x64xf32>
    %85 = arith.addf %84, %83 : vector<8x64xf32>
    %86 = arith.divf %84, %85 : vector<8x64xf32>
    %87 = vector.extract_strided_slice %86 {offsets = [0, 0], sizes = [8, 32], strides = [1, 1]} : vector<8x64xf32> to vector<8x32xf32>
    %88 = vector.extract_strided_slice %86 {offsets = [0, 32], sizes = [8, 32], strides = [1, 1]} : vector<8x64xf32> to vector<8x32xf32>
    %89 = vector.extract_strided_slice %77 {offsets = [0, 64], sizes = [8, 32], strides = [1, 1]} : vector<8x160xf32> to vector<8x32xf32>
    %90 = arith.mulf %87, %76 : vector<8x32xf32>
    %cst_33 = arith.constant dense<0.000000e+00> : vector<8x32xf32>
    %91 = tpu.matmul %90, %9, %cst_33 {dimension_numbers = #tpu.dot_dimension_numbers<[1], [0], [0], [1], [0, 0, 1, 1], [], []>} : vector<8x32xf32>, vector<32x32xf32>, vector<8x32xf32> -> vector<8x32xf32>
    %92 = arith.addf %89, %91 : vector<8x32xf32>
    %93 = math.tanh %92 : vector<8x32xf32>
    %94 = arith.mulf %88, %76 : vector<8x32xf32>
    %cst_34 = arith.constant 1.000000e+00 : f32
    %95 = vector.broadcast %cst_34 : f32 to vector<8x32xf32>
    %96 = arith.subf %95, %88 : vector<8x32xf32>
    %97 = arith.mulf %96, %93 : vector<8x32xf32>
    %98 = arith.mulf %97, %78 : vector<8x32xf32>
    %99 = arith.addf %94, %98 : vector<8x32xf32>
    %100 = vector.extract_strided_slice %13 {offsets = [24, 0], sizes = [8, 160], strides = [1, 1]} : vector<64x160xf32> to vector<8x160xf32>
    %101 = vector.extract_strided_slice %29 {offsets = [24, 0], sizes = [8, 32], strides = [1, 1]} : vector<64x32xf32> to vector<8x32xf32>
    %cst_35 = arith.constant dense<0.000000e+00> : vector<8x64xf32>
    %102 = tpu.matmul %99, %8, %cst_35 {dimension_numbers = #tpu.dot_dimension_numbers<[1], [0], [0], [1], [0, 0, 1, 1], [], []>} : vector<8x32xf32>, vector<32x64xf32>, vector<8x64xf32> -> vector<8x64xf32>
    %103 = vector.extract_strided_slice %100 {offsets = [0, 0], sizes = [8, 64], strides = [1, 1]} : vector<8x160xf32> to vector<8x64xf32>
    %104 = arith.addf %103, %102 : vector<8x64xf32>
    %105 = arith.negf %104 : vector<8x64xf32>
    %106 = math.exp %105 : vector<8x64xf32>
    %cst_36 = arith.constant 1.000000e+00 : f32
    %107 = vector.broadcast %cst_36 : f32 to vector<8x64xf32>
    %108 = arith.addf %107, %106 : vector<8x64xf32>
    %109 = arith.divf %107, %108 : vector<8x64xf32>
    %110 = vector.extract_strided_slice %109 {offsets = [0, 0], sizes = [8, 32], strides = [1, 1]} : vector<8x64xf32> to vector<8x32xf32>
    %111 = vector.extract_strided_slice %109 {offsets = [0, 32], sizes = [8, 32], strides = [1, 1]} : vector<8x64xf32> to vector<8x32xf32>
    %112 = vector.extract_strided_slice %100 {offsets = [0, 64], sizes = [8, 32], strides = [1, 1]} : vector<8x160xf32> to vector<8x32xf32>
    %113 = arith.mulf %110, %99 : vector<8x32xf32>
    %cst_37 = arith.constant dense<0.000000e+00> : vector<8x32xf32>
    %114 = tpu.matmul %113, %9, %cst_37 {dimension_numbers = #tpu.dot_dimension_numbers<[1], [0], [0], [1], [0, 0, 1, 1], [], []>} : vector<8x32xf32>, vector<32x32xf32>, vector<8x32xf32> -> vector<8x32xf32>
    %115 = arith.addf %112, %114 : vector<8x32xf32>
    %116 = math.tanh %115 : vector<8x32xf32>
    %117 = arith.mulf %111, %99 : vector<8x32xf32>
    %cst_38 = arith.constant 1.000000e+00 : f32
    %118 = vector.broadcast %cst_38 : f32 to vector<8x32xf32>
    %119 = arith.subf %118, %111 : vector<8x32xf32>
    %120 = arith.mulf %119, %116 : vector<8x32xf32>
    %121 = arith.mulf %120, %101 : vector<8x32xf32>
    %122 = arith.addf %117, %121 : vector<8x32xf32>
    %123 = vector.extract_strided_slice %13 {offsets = [32, 0], sizes = [8, 160], strides = [1, 1]} : vector<64x160xf32> to vector<8x160xf32>
    %124 = vector.extract_strided_slice %29 {offsets = [32, 0], sizes = [8, 32], strides = [1, 1]} : vector<64x32xf32> to vector<8x32xf32>
    %cst_39 = arith.constant dense<0.000000e+00> : vector<8x64xf32>
    %125 = tpu.matmul %122, %8, %cst_39 {dimension_numbers = #tpu.dot_dimension_numbers<[1], [0], [0], [1], [0, 0, 1, 1], [], []>} : vector<8x32xf32>, vector<32x64xf32>, vector<8x64xf32> -> vector<8x64xf32>
    %126 = vector.extract_strided_slice %123 {offsets = [0, 0], sizes = [8, 64], strides = [1, 1]} : vector<8x160xf32> to vector<8x64xf32>
    %127 = arith.addf %126, %125 : vector<8x64xf32>
    %128 = arith.negf %127 : vector<8x64xf32>
    %129 = math.exp %128 : vector<8x64xf32>
    %cst_40 = arith.constant 1.000000e+00 : f32
    %130 = vector.broadcast %cst_40 : f32 to vector<8x64xf32>
    %131 = arith.addf %130, %129 : vector<8x64xf32>
    %132 = arith.divf %130, %131 : vector<8x64xf32>
    %133 = vector.extract_strided_slice %132 {offsets = [0, 0], sizes = [8, 32], strides = [1, 1]} : vector<8x64xf32> to vector<8x32xf32>
    %134 = vector.extract_strided_slice %132 {offsets = [0, 32], sizes = [8, 32], strides = [1, 1]} : vector<8x64xf32> to vector<8x32xf32>
    %135 = vector.extract_strided_slice %123 {offsets = [0, 64], sizes = [8, 32], strides = [1, 1]} : vector<8x160xf32> to vector<8x32xf32>
    %136 = arith.mulf %133, %122 : vector<8x32xf32>
    %cst_41 = arith.constant dense<0.000000e+00> : vector<8x32xf32>
    %137 = tpu.matmul %136, %9, %cst_41 {dimension_numbers = #tpu.dot_dimension_numbers<[1], [0], [0], [1], [0, 0, 1, 1], [], []>} : vector<8x32xf32>, vector<32x32xf32>, vector<8x32xf32> -> vector<8x32xf32>
    %138 = arith.addf %135, %137 : vector<8x32xf32>
    %139 = math.tanh %138 : vector<8x32xf32>
    %140 = arith.mulf %134, %122 : vector<8x32xf32>
    %cst_42 = arith.constant 1.000000e+00 : f32
    %141 = vector.broadcast %cst_42 : f32 to vector<8x32xf32>
    %142 = arith.subf %141, %134 : vector<8x32xf32>
    %143 = arith.mulf %142, %139 : vector<8x32xf32>
    %144 = arith.mulf %143, %124 : vector<8x32xf32>
    %145 = arith.addf %140, %144 : vector<8x32xf32>
    %146 = vector.extract_strided_slice %13 {offsets = [40, 0], sizes = [8, 160], strides = [1, 1]} : vector<64x160xf32> to vector<8x160xf32>
    %147 = vector.extract_strided_slice %29 {offsets = [40, 0], sizes = [8, 32], strides = [1, 1]} : vector<64x32xf32> to vector<8x32xf32>
    %cst_43 = arith.constant dense<0.000000e+00> : vector<8x64xf32>
    %148 = tpu.matmul %145, %8, %cst_43 {dimension_numbers = #tpu.dot_dimension_numbers<[1], [0], [0], [1], [0, 0, 1, 1], [], []>} : vector<8x32xf32>, vector<32x64xf32>, vector<8x64xf32> -> vector<8x64xf32>
    %149 = vector.extract_strided_slice %146 {offsets = [0, 0], sizes = [8, 64], strides = [1, 1]} : vector<8x160xf32> to vector<8x64xf32>
    %150 = arith.addf %149, %148 : vector<8x64xf32>
    %151 = arith.negf %150 : vector<8x64xf32>
    %152 = math.exp %151 : vector<8x64xf32>
    %cst_44 = arith.constant 1.000000e+00 : f32
    %153 = vector.broadcast %cst_44 : f32 to vector<8x64xf32>
    %154 = arith.addf %153, %152 : vector<8x64xf32>
    %155 = arith.divf %153, %154 : vector<8x64xf32>
    %156 = vector.extract_strided_slice %155 {offsets = [0, 0], sizes = [8, 32], strides = [1, 1]} : vector<8x64xf32> to vector<8x32xf32>
    %157 = vector.extract_strided_slice %155 {offsets = [0, 32], sizes = [8, 32], strides = [1, 1]} : vector<8x64xf32> to vector<8x32xf32>
    %158 = vector.extract_strided_slice %146 {offsets = [0, 64], sizes = [8, 32], strides = [1, 1]} : vector<8x160xf32> to vector<8x32xf32>
    %159 = arith.mulf %156, %145 : vector<8x32xf32>
    %cst_45 = arith.constant dense<0.000000e+00> : vector<8x32xf32>
    %160 = tpu.matmul %159, %9, %cst_45 {dimension_numbers = #tpu.dot_dimension_numbers<[1], [0], [0], [1], [0, 0, 1, 1], [], []>} : vector<8x32xf32>, vector<32x32xf32>, vector<8x32xf32> -> vector<8x32xf32>
    %161 = arith.addf %158, %160 : vector<8x32xf32>
    %162 = math.tanh %161 : vector<8x32xf32>
    %163 = arith.mulf %157, %145 : vector<8x32xf32>
    %cst_46 = arith.constant 1.000000e+00 : f32
    %164 = vector.broadcast %cst_46 : f32 to vector<8x32xf32>
    %165 = arith.subf %164, %157 : vector<8x32xf32>
    %166 = arith.mulf %165, %162 : vector<8x32xf32>
    %167 = arith.mulf %166, %147 : vector<8x32xf32>
    %168 = arith.addf %163, %167 : vector<8x32xf32>
    %169 = vector.extract_strided_slice %13 {offsets = [48, 0], sizes = [8, 160], strides = [1, 1]} : vector<64x160xf32> to vector<8x160xf32>
    %170 = vector.extract_strided_slice %29 {offsets = [48, 0], sizes = [8, 32], strides = [1, 1]} : vector<64x32xf32> to vector<8x32xf32>
    %cst_47 = arith.constant dense<0.000000e+00> : vector<8x64xf32>
    %171 = tpu.matmul %168, %8, %cst_47 {dimension_numbers = #tpu.dot_dimension_numbers<[1], [0], [0], [1], [0, 0, 1, 1], [], []>} : vector<8x32xf32>, vector<32x64xf32>, vector<8x64xf32> -> vector<8x64xf32>
    %172 = vector.extract_strided_slice %169 {offsets = [0, 0], sizes = [8, 64], strides = [1, 1]} : vector<8x160xf32> to vector<8x64xf32>
    %173 = arith.addf %172, %171 : vector<8x64xf32>
    %174 = arith.negf %173 : vector<8x64xf32>
    %175 = math.exp %174 : vector<8x64xf32>
    %cst_48 = arith.constant 1.000000e+00 : f32
    %176 = vector.broadcast %cst_48 : f32 to vector<8x64xf32>
    %177 = arith.addf %176, %175 : vector<8x64xf32>
    %178 = arith.divf %176, %177 : vector<8x64xf32>
    %179 = vector.extract_strided_slice %178 {offsets = [0, 0], sizes = [8, 32], strides = [1, 1]} : vector<8x64xf32> to vector<8x32xf32>
    %180 = vector.extract_strided_slice %178 {offsets = [0, 32], sizes = [8, 32], strides = [1, 1]} : vector<8x64xf32> to vector<8x32xf32>
    %181 = vector.extract_strided_slice %169 {offsets = [0, 64], sizes = [8, 32], strides = [1, 1]} : vector<8x160xf32> to vector<8x32xf32>
    %182 = arith.mulf %179, %168 : vector<8x32xf32>
    %cst_49 = arith.constant dense<0.000000e+00> : vector<8x32xf32>
    %183 = tpu.matmul %182, %9, %cst_49 {dimension_numbers = #tpu.dot_dimension_numbers<[1], [0], [0], [1], [0, 0, 1, 1], [], []>} : vector<8x32xf32>, vector<32x32xf32>, vector<8x32xf32> -> vector<8x32xf32>
    %184 = arith.addf %181, %183 : vector<8x32xf32>
    %185 = math.tanh %184 : vector<8x32xf32>
    %186 = arith.mulf %180, %168 : vector<8x32xf32>
    %cst_50 = arith.constant 1.000000e+00 : f32
    %187 = vector.broadcast %cst_50 : f32 to vector<8x32xf32>
    %188 = arith.subf %187, %180 : vector<8x32xf32>
    %189 = arith.mulf %188, %185 : vector<8x32xf32>
    %190 = arith.mulf %189, %170 : vector<8x32xf32>
    %191 = arith.addf %186, %190 : vector<8x32xf32>
    %192 = vector.extract_strided_slice %13 {offsets = [56, 0], sizes = [8, 160], strides = [1, 1]} : vector<64x160xf32> to vector<8x160xf32>
    %193 = vector.extract_strided_slice %29 {offsets = [56, 0], sizes = [8, 32], strides = [1, 1]} : vector<64x32xf32> to vector<8x32xf32>
    %cst_51 = arith.constant dense<0.000000e+00> : vector<8x64xf32>
    %194 = tpu.matmul %191, %8, %cst_51 {dimension_numbers = #tpu.dot_dimension_numbers<[1], [0], [0], [1], [0, 0, 1, 1], [], []>} : vector<8x32xf32>, vector<32x64xf32>, vector<8x64xf32> -> vector<8x64xf32>
    %195 = vector.extract_strided_slice %192 {offsets = [0, 0], sizes = [8, 64], strides = [1, 1]} : vector<8x160xf32> to vector<8x64xf32>
    %196 = arith.addf %195, %194 : vector<8x64xf32>
    %197 = arith.negf %196 : vector<8x64xf32>
    %198 = math.exp %197 : vector<8x64xf32>
    %cst_52 = arith.constant 1.000000e+00 : f32
    %199 = vector.broadcast %cst_52 : f32 to vector<8x64xf32>
    %200 = arith.addf %199, %198 : vector<8x64xf32>
    %201 = arith.divf %199, %200 : vector<8x64xf32>
    %202 = vector.extract_strided_slice %201 {offsets = [0, 0], sizes = [8, 32], strides = [1, 1]} : vector<8x64xf32> to vector<8x32xf32>
    %203 = vector.extract_strided_slice %201 {offsets = [0, 32], sizes = [8, 32], strides = [1, 1]} : vector<8x64xf32> to vector<8x32xf32>
    %204 = vector.extract_strided_slice %192 {offsets = [0, 64], sizes = [8, 32], strides = [1, 1]} : vector<8x160xf32> to vector<8x32xf32>
    %205 = arith.mulf %202, %191 : vector<8x32xf32>
    %cst_53 = arith.constant dense<0.000000e+00> : vector<8x32xf32>
    %206 = tpu.matmul %205, %9, %cst_53 {dimension_numbers = #tpu.dot_dimension_numbers<[1], [0], [0], [1], [0, 0, 1, 1], [], []>} : vector<8x32xf32>, vector<32x32xf32>, vector<8x32xf32> -> vector<8x32xf32>
    %207 = arith.addf %204, %206 : vector<8x32xf32>
    %208 = math.tanh %207 : vector<8x32xf32>
    %209 = arith.mulf %203, %191 : vector<8x32xf32>
    %cst_54 = arith.constant 1.000000e+00 : f32
    %210 = vector.broadcast %cst_54 : f32 to vector<8x32xf32>
    %211 = arith.subf %210, %203 : vector<8x32xf32>
    %212 = arith.mulf %211, %208 : vector<8x32xf32>
    %213 = arith.mulf %212, %193 : vector<8x32xf32>
    %214 = arith.addf %209, %213 : vector<8x32xf32>
    %c0_55 = arith.constant 0 : index
    %c0_56 = arith.constant 0 : index
    %215 = vector.load %arg12[%c0_55, %c0_56] : memref<8x32xf32, #tpu.memory_space<vmem>>, vector<8x32xf32>
    tpu.vector_store %arg12[%c0_55, %c0_56], %214 {strides = array<i32>} : memref<8x32xf32, #tpu.memory_space<vmem>>, vector<8x32xf32>,
    %216 = tpu.concatenate %53, %76, %99, %122, %145, %168, %191, %214 in 1 : vector<8x32xf32>, vector<8x32xf32>, vector<8x32xf32>, vector<8x32xf32>, vector<8x32xf32>, vector<8x32xf32>, vector<8x32xf32>, vector<8x32xf32> -> vector<8x256xf32>
    %c0_57 = arith.constant 0 : index
    %c0_58 = arith.constant 0 : index
    %217 = vector.load %arg10[%c0_57, %c0_58] : memref<8x256xf32, #tpu.memory_space<vmem>>, vector<8x256xf32>
    tpu.vector_store %arg10[%c0_57, %c0_58], %216 {strides = array<i32>} : memref<8x256xf32, #tpu.memory_space<vmem>>, vector<8x256xf32>,
    %c0_i32_59 = arith.constant 0 : i32
    %218 = arith.cmpi eq, %arg0, %c0_i32_59 : i32
    %219 = arith.extui %218 : i1 to i32
    %c0_i32_60 = arith.constant 0 : i32
    %220 = arith.cmpi ne, %219, %c0_i32_60 : i32
    scf.if %220 {
      %c0_61 = arith.constant 0 : index
      %c0_62 = arith.constant 0 : index
      %221 = vector.load %arg11[%c0_61, %c0_62] : memref<8x32xf32, #tpu.memory_space<vmem>>, vector<8x32xf32>
      tpu.vector_store %arg11[%c0_61, %c0_62], %214 {strides = array<i32>} : memref<8x32xf32, #tpu.memory_space<vmem>>, vector<8x32xf32>,
    } else {
    }
    return
  }
  func.func @transform_0(%arg0: i32) -> (i32, i32) {
    %c0_i32 = arith.constant 0 : i32
    %c0_i32_0 = arith.constant 0 : i32
    return %arg0, %c0_i32 : i32, i32
  }
  func.func @transform_1(%arg0: i32) -> (i32, i32) {
    %c0_i32 = arith.constant 0 : i32
    %c0_i32_0 = arith.constant 0 : i32
    %c0_i32_1 = arith.constant 0 : i32
    return %c0_i32, %c0_i32_0 : i32, i32
  }
  func.func @transform_2(%arg0: i32) -> (i32, i32) {
    %c0_i32 = arith.constant 0 : i32
    %c0_i32_0 = arith.constant 0 : i32
    %c0_i32_1 = arith.constant 0 : i32
    return %c0_i32, %c0_i32_0 : i32, i32
  }
  func.func @transform_3(%arg0: i32) -> (i32, i32) {
    %c0_i32 = arith.constant 0 : i32
    %c0_i32_0 = arith.constant 0 : i32
    %c0_i32_1 = arith.constant 0 : i32
    return %c0_i32, %c0_i32_0 : i32, i32
  }
  func.func @transform_4(%arg0: i32) -> (i32, i32) {
    %c0_i32 = arith.constant 0 : i32
    %c0_i32_0 = arith.constant 0 : i32
    %c0_i32_1 = arith.constant 0 : i32
    return %c0_i32, %c0_i32_0 : i32, i32
  }
  func.func @transform_5(%arg0: i32) -> (i32, i32) {
    %c0_i32 = arith.constant 0 : i32
    %c0_i32_0 = arith.constant 0 : i32
    %c0_i32_1 = arith.constant 0 : i32
    return %c0_i32, %c0_i32_0 : i32, i32
  }
  func.func @transform_6(%arg0: i32) -> (i32, i32) {
    %c0_i32 = arith.constant 0 : i32
    %c0_i32_0 = arith.constant 0 : i32
    %c0_i32_1 = arith.constant 0 : i32
    return %c0_i32, %c0_i32_0 : i32, i32
  }
  func.func @transform_7(%arg0: i32) -> (i32, i32) {
    %c0_i32 = arith.constant 0 : i32
    %c0_i32_0 = arith.constant 0 : i32
    %c0_i32_1 = arith.constant 0 : i32
    return %c0_i32, %c0_i32_0 : i32, i32
  }
  func.func @transform_8(%arg0: i32) -> (i32, i32) {
    %c0_i32 = arith.constant 0 : i32
    %c0_i32_0 = arith.constant 0 : i32
    %c0_i32_1 = arith.constant 0 : i32
    return %c0_i32, %c0_i32_0 : i32, i32
  }
  func.func @transform_9(%arg0: i32) -> (i32, i32) {
    %c0_i32 = arith.constant 0 : i32
    %c0_i32_0 = arith.constant 0 : i32
    return %c0_i32, %arg0 : i32, i32
  }
  func.func @transform_10(%arg0: i32) -> (i32, i32) {
    %c0_i32 = arith.constant 0 : i32
    %c0_i32_0 = arith.constant 0 : i32
    %c0_i32_1 = arith.constant 0 : i32
    return %c0_i32, %c0_i32_0 : i32, i32
  }
}

</mosaic_0001>

<llo_original>
// kernel: tpu_custom_call.1
$region0: #{tpu_custom_call.1}
  #allocation0 [shape = 'u32[]', space=smem, size = 0x4, offset = 0x4, fixed_abs, tag = 'smem constant byte address 0x4 - core index']
  #allocation1 [shape = 'u32[144,128]{1,0:T(1,128)}', space=vmem, size = 0x12000, scoped, tag = 'internal scratch']
  #allocation2 [shape = 'f32[8,32]{1,0:T(8,128)}', space=vmem, size = 0x1000, scoped, tag = 'scratch operand']
  %s0 = inlined_call_operand.hbm [shape: f32[64,64], index: 0, kind: input, shape index: {}]
  %s1 = inlined_call_operand.hbm [shape: f32[64,160], index: 1, kind: input, shape index: {}]
  %s2 = inlined_call_operand.vmem [shape: f32[1,160], index: 2, kind: input, shape index: {}]
  %s3 = inlined_call_operand.hbm [shape: f32[32,32], index: 3, kind: input, shape index: {}]
  %s4 = inlined_call_operand.hbm [shape: f32[32,32], index: 4, kind: input, shape index: {}]
  %s5 = inlined_call_operand.vmem [shape: f32[1,32], index: 5, kind: input, shape index: {}]
  %s6 = inlined_call_operand.hbm [shape: f32[32,64], index: 6, kind: input, shape index: {}]
  %s7 = inlined_call_operand.hbm [shape: f32[32,32], index: 7, kind: input, shape index: {}]
  %s8 = inlined_call_operand.vmem [shape: f32[8,32], index: 8, kind: input, shape index: {}]
  %s9 = inlined_call_operand.hbm [shape: f32[8,256], index: 9, kind: output, shape index: {0}]
  %s10 = inlined_call_operand.hbm [shape: f32[8,32], index: 10, kind: output, shape index: {1}]
  %11 = xla_tuple %s9, %s10
  %s12 = sld [smem:[#allocation0]]
  $region86: #{tpu_custom_call.1} parent=0
    _
  %s14 = ssub.s32 1, %s12
  %s15 = scalar_select 0, %s14, %s12
  $region1: #{tpu_custom_call.1} parent=0
    #allocation3 [shape = 'u8[32768]{0}', space=vmem, size = 0x8000, scoped, tag = 'input window, operand 0, single buffered']
    #allocation4 [shape = 's32[1]{0}', space=sflag, size = 0x4, scoped, tag = 'scoped memory for tpu_custom_call.1']
    #allocation5 [shape = 's32[1]{0}', space=sflag, size = 0x4, scoped, tag = 'scoped memory for tpu_custom_call.1']
    #allocation6 [shape = 'u8[65536]{0}', space=vmem, size = 0x10000, scoped, tag = 'input window, operand 1, single buffered']
    #allocation7 [shape = 's32[1]{0}', space=sflag, size = 0x4, scoped, tag = 'scoped memory for tpu_custom_call.1']
    #allocation8 [shape = 'u8[16384]{0}', space=vmem, size = 0x4000, scoped, tag = 'input window, operand 3, single buffered']
    #allocation9 [shape = 'u8[16384]{0}', space=vmem, size = 0x4000, scoped, tag = 'input window, operand 4, single buffered']
    #allocation10 [shape = 's32[1]{0}', space=sflag, size = 0x4, scoped, tag = 'scoped memory for tpu_custom_call.1']
    #allocation11 [shape = 'u8[16384]{0}', space=vmem, size = 0x4000, scoped, tag = 'input window, operand 6, single buffered']
    #allocation12 [shape = 'u8[16384]{0}', space=vmem, size = 0x4000, scoped, tag = 'input window, operand 7, single buffered']
    #allocation13 [shape = 's32[1]{0}', space=sflag, size = 0x4, scoped, tag = 'scoped memory for tpu_custom_call.1']
    #allocation14 [shape = 'u8[8192]{0}', space=vmem, size = 0x2000, scoped, tag = 'output window, operand 0, single buffered']
    #allocation15 [shape = 'u8[4096]{0}', space=vmem, size = 0x1000, scoped, tag = 'output window, operand 1, single buffered']
    #allocation16 [shape = 's32[1]{0}', space=sflag, size = 0x4, scoped, tag = 'scoped memory for tpu_custom_call.1']
    %16 = vsyncpa [#allocation4], 0
    %17 = vsyncpa [#allocation7], 0
    %18 = vsyncpa [#allocation10], 0
    %19 = vsyncpa [#allocation13], 0
    %20 = vsyncpa [#allocation5], 0
    %21 = vsyncpa [#allocation16], 0
    // Predicated region
    $region2: #{tpu_custom_call.1} parent=1 // pred_check
      _
    $region3: #{tpu_custom_call.1} parent=1 // pred_check_branch
      %23 = sbr.rel (0) target = $region5
    $region4: #{tpu_custom_call.1} parent=1 // pred_region
      %s25 = ssub.s32 1024, 1024
      %26 = vsyncadd [#allocation4], %s25
      %s27 = sshll.u32 [#allocation3], 4
      %s28 = int_to_ptr.vmem [resolvable:$true] %s27
      %33 = dma.hbm_to_vmem [thread:$0]  %s0, 1024, %s28, [#allocation4], 128, 128, 8
    $region5: #{tpu_custom_call.1} parent=1 // pred_fallthru
      _
    // Predicated region
    $region6: #{tpu_custom_call.1} parent=1 // pred_check
      _
    $region7: #{tpu_custom_call.1} parent=1 // pred_check_branch
      %35 = sbr.rel (0) target = $region9
    $region8: #{tpu_custom_call.1} parent=1 // pred_region
      %s37 = ssub.s32 2048, 2048
      %38 = vsyncadd [#allocation7], %s37
      %s39 = sshll.u32 [#allocation6], 4
      %s40 = int_to_ptr.vmem [resolvable:$true] %s39
      %45 = dma.hbm_to_vmem [thread:$0]  %s1, 2048, %s40, [#allocation7], 256, 256, 16
    $region9: #{tpu_custom_call.1} parent=1 // pred_fallthru
      _
    // Predicated region
    $region10: #{tpu_custom_call.1} parent=1 // pred_check
      _
    $region11: #{tpu_custom_call.1} parent=1 // pred_check_branch
      %47 = sbr.rel (0) target = $region13
    $region12: #{tpu_custom_call.1} parent=1 // pred_region
      _
    $region13: #{tpu_custom_call.1} parent=1 // pred_fallthru
      _
    // Predicated region
    $region14: #{tpu_custom_call.1} parent=1 // pred_check
      _
    $region15: #{tpu_custom_call.1} parent=1 // pred_check_branch
      %49 = sbr.rel (0) target = $region17
    $region16: #{tpu_custom_call.1} parent=1 // pred_region
      %s51 = ssub.s32 512, 512
      %52 = vsyncadd [#allocation7], %s51
      %s53 = sshll.u32 [#allocation8], 4
      %s54 = int_to_ptr.vmem [resolvable:$true] %s53
      %59 = dma.hbm_to_vmem [thread:$0]  %s3, 512, %s54, [#allocation7], 128, 128, 8
    $region17: #{tpu_custom_call.1} parent=1 // pred_fallthru
      _
    // Predicated region
    $region18: #{tpu_custom_call.1} parent=1 // pred_check
      _
    $region19: #{tpu_custom_call.1} parent=1 // pred_check_branch
      %61 = sbr.rel (0) target = $region21
    $region20: #{tpu_custom_call.1} parent=1 // pred_region
      %s63 = ssub.s32 512, 512
      %64 = vsyncadd [#allocation10], %s63
      %s65 = sshll.u32 [#allocation9], 4
      %s66 = int_to_ptr.vmem [resolvable:$true] %s65
      %71 = dma.hbm_to_vmem [thread:$0]  %s4, 512, %s66, [#allocation10], 128, 128, 8
    $region21: #{tpu_custom_call.1} parent=1 // pred_fallthru
      _
    // Predicated region
    $region22: #{tpu_custom_call.1} parent=1 // pred_check
      _
    $region23: #{tpu_custom_call.1} parent=1 // pred_check_branch
      %73 = sbr.rel (0) target = $region25
    $region24: #{tpu_custom_call.1} parent=1 // pred_region
      _
    $region25: #{tpu_custom_call.1} parent=1 // pred_fallthru
      _
    // Predicated region
    $region26: #{tpu_custom_call.1} parent=1 // pred_check
      _
    $region27: #{tpu_custom_call.1} parent=1 // pred_check_branch
      %75 = sbr.rel (0) target = $region29
    $region28: #{tpu_custom_call.1} parent=1 // pred_region
      %s77 = ssub.s32 512, 512
      %78 = vsyncadd [#allocation10], %s77
      %s79 = sshll.u32 [#allocation11], 4
      %s80 = int_to_ptr.vmem [resolvable:$true] %s79
      %85 = dma.hbm_to_vmem [thread:$0]  %s6, 512, %s80, [#allocation10], 128, 128, 8
    $region29: #{tpu_custom_call.1} parent=1 // pred_fallthru
      _
    // Predicated region
    $region30: #{tpu_custom_call.1} parent=1 // pred_check
      _
    $region31: #{tpu_custom_call.1} parent=1 // pred_check_branch
      %87 = sbr.rel (0) target = $region33
    $region32: #{tpu_custom_call.1} parent=1 // pred_region
      %s89 = ssub.s32 512, 512
      %90 = vsyncadd [#allocation13], %s89
      %s91 = sshll.u32 [#allocation12], 4
      %s92 = int_to_ptr.vmem [resolvable:$true] %s91
      %97 = dma.hbm_to_vmem [thread:$0]  %s7, 512, %s92, [#allocation13], 128, 128, 8
    $region33: #{tpu_custom_call.1} parent=1 // pred_fallthru
      _
    // Predicated region
    $region34: #{tpu_custom_call.1} parent=1 // pred_check
      _
    $region35: #{tpu_custom_call.1} parent=1 // pred_check_branch
      %99 = sbr.rel (0) target = $region37
    $region36: #{tpu_custom_call.1} parent=1 // pred_region
      _
    $region37: #{tpu_custom_call.1} parent=1 // pred_fallthru
      _
    // Predicated region
    $region38: #{tpu_custom_call.1} parent=1 // pred_check
      _
    $region39: #{tpu_custom_call.1} parent=1 // pred_check_branch
      %101 = sbr.rel (0) target = $region41
    $region40: #{tpu_custom_call.1} parent=1 // pred_region
      %102 = dma.done [#allocation4], 1024
    $region41: #{tpu_custom_call.1} parent=1 // pred_fallthru
      _
    // Predicated region
    $region42: #{tpu_custom_call.1} parent=1 // pred_check
      _
    $region43: #{tpu_custom_call.1} parent=1 // pred_check_branch
      %104 = sbr.rel (0) target = $region45
    $region44: #{tpu_custom_call.1} parent=1 // pred_region
      %105 = dma.done [#allocation7], 2048
    $region45: #{tpu_custom_call.1} parent=1 // pred_fallthru
      _
    // Predicated region
    $region46: #{tpu_custom_call.1} parent=1 // pred_check
      _
    $region47: #{tpu_custom_call.1} parent=1 // pred_check_branch
      %107 = sbr.rel (0) target = $region49
    $region48: #{tpu_custom_call.1} parent=1 // pred_region
      %108 = dma.done [#allocation7], 512
    $region49: #{tpu_custom_call.1} parent=1 // pred_fallthru
      _
    // Predicated region
    $region50: #{tpu_custom_call.1} parent=1 // pred_check
      _
    $region51: #{tpu_custom_call.1} parent=1 // pred_check_branch
      %110 = sbr.rel (0) target = $region53
    $region52: #{tpu_custom_call.1} parent=1 // pred_region
      %111 = dma.done [#allocation10], 512
    $region53: #{tpu_custom_call.1} parent=1 // pred_fallthru
      _
    // Predicated region
    $region54: #{tpu_custom_call.1} parent=1 // pred_check
      _
    $region55: #{tpu_custom_call.1} parent=1 // pred_check_branch
      %113 = sbr.rel (0) target = $region57
    $region56: #{tpu_custom_call.1} parent=1 // pred_region
      %114 = dma.done [#allocation10], 512
    $region57: #{tpu_custom_call.1} parent=1 // pred_fallthru
      _
    // Predicated region
    $region58: #{tpu_custom_call.1} parent=1 // pred_check
      _
    $region59: #{tpu_custom_call.1} parent=1 // pred_check_branch
      %116 = sbr.rel (0) target = $region61
    $region60: #{tpu_custom_call.1} parent=1 // pred_region
      %117 = dma.done [#allocation13], 512
    $region61: #{tpu_custom_call.1} parent=1 // pred_fallthru
      _
    %p118 = scmp.eq.s32.totalorder 0, 0
    // Predicated region
    $region62: #{tpu_custom_call.1} parent=1 // pred_check
      %p119 = pneg %p118
    $region63: #{tpu_custom_call.1} parent=1 // pred_check_branch
      %121 = sbr.rel (%p119) target = $region65
    $region64: #{tpu_custom_call.1} parent=1 // pred_region
      %v122 = vld [vmem:[%s8] sm:$0xff]
      %vm123 = vcmask 261120
      %124 = vst.msk [vmem:[#allocation2] sm:$0xff] %vm123, %v122
    $region65: #{tpu_custom_call.1} parent=1 // pred_fallthru
      _
    %v125 = vld [vmem:[#allocation6] sm:$0xff]
    %v126 = vld [vmem:[#allocation6 + $0x8] sm:$0xff]
    %v127 = vld [vmem:[#allocation6 + $0x10] sm:$0xff]
    %v128 = vld [vmem:[#allocation6 + $0x18] sm:$0xff]
    %v129 = vld [vmem:[#allocation6 + $0x20] sm:$0xff]
    %v130 = vld [vmem:[#allocation6 + $0x28] sm:$0xff]
    %v131 = vld [vmem:[#allocation6 + $0x30] sm:$0xff]
    %v132 = vld [vmem:[#allocation6 + $0x38] sm:$0xff]
    %v133 = vld [vmem:[#allocation6 + $0x40] sm:$0xff]
    %v134 = vld [vmem:[#allocation6 + $0x48] sm:$0xff]
    %v135 = vld [vmem:[#allocation6 + $0x50] sm:$0xff]
    %v136 = vld [vmem:[#allocation6 + $0x58] sm:$0xff]
    %v137 = vld [vmem:[#allocation6 + $0x60] sm:$0xff]
    %v138 = vld [vmem:[#allocation6 + $0x68] sm:$0xff]
    %v139 = vld [vmem:[#allocation6 + $0x70] sm:$0xff]
    %v140 = vld [vmem:[#allocation6 + $0x78] sm:$0xff]
    %v141 = vld [vmem:[%s2] sm:$0x3]
    %v142 = vld [vmem:[#allocation8] sm:$0xff]
    %v143 = vld [vmem:[#allocation8 + $0x8] sm:$0xff]
    %v144 = vld [vmem:[#allocation8 + $0x10] sm:$0xff]
    %v145 = vld [vmem:[#allocation8 + $0x18] sm:$0xff]
    %v146 = vld [vmem:[#allocation9] sm:$0xff]
    %v147 = vld [vmem:[#allocation9 + $0x8] sm:$0xff]
    %v148 = vld [vmem:[#allocation9 + $0x10] sm:$0xff]
    %v149 = vld [vmem:[#allocation9 + $0x18] sm:$0xff]
    %v150 = vld [vmem:[%s5] sm:$0x1]
    %v151 = vld [vmem:[#allocation11] sm:$0xff]
    %v152 = vld [vmem:[#allocation11 + $0x8] sm:$0xff]
    %v153 = vld [vmem:[#allocation11 + $0x10] sm:$0xff]
    %v154 = vld [vmem:[#allocation11 + $0x18] sm:$0xff]
    %v155 = vld [vmem:[#allocation12] sm:$0xff]
    %v156 = vld [vmem:[#allocation12 + $0x8] sm:$0xff]
    %v157 = vld [vmem:[#allocation12 + $0x10] sm:$0xff]
    %v158 = vld [vmem:[#allocation12 + $0x18] sm:$0xff]
    %v159 = vld [vmem:[#allocation3] sm:$0xff]
    %v160 = vld [vmem:[#allocation3 + $0x8] sm:$0xff]
    %v161 = vld [vmem:[#allocation3 + $0x10] sm:$0xff]
    %v162 = vld [vmem:[#allocation3 + $0x18] sm:$0xff]
    %v163 = vld [vmem:[#allocation3 + $0x20] sm:$0xff]
    %v164 = vld [vmem:[#allocation3 + $0x28] sm:$0xff]
    %v165 = vld [vmem:[#allocation3 + $0x30] sm:$0xff]
    %v166 = vld [vmem:[#allocation3 + $0x38] sm:$0xff]
    %v168 = vlaneseq
    %v169 = vshrl.u32 %v168, 7
    %v170 = vsub.s32 0, %v169
    %v171 = vrot.slane %v141, %v170
    %v172 = vlaneseq
    %v173 = vshrl.u32 %v172, 7
    %v174 = vsub.s32 1, %v173
    %v175 = vrot.slane %v141, %v174
    %vm178 = vcmask 523264
    %v180 = vsel %vm178, %v159, 0
    %v183 = vsel %vm178, %v160, 0
    %v186 = vsel %vm178, %v161, 0
    %v189 = vsel %vm178, %v162, 0
    %v192 = vsel %vm178, %v163, 0
    %v195 = vsel %vm178, %v164, 0
    %v198 = vsel %vm178, %v165, 0
    %v201 = vsel %vm178, %v166, 0
    %203 = vmatprep.subr.mxu0 %v126
    %204 = vmatpush1.msra.mxu0 %v125
    %205 = vmatprep.subr.mxu0 %v128
    %206 = vmatpush1.msra.mxu0 %v127
    %207 = vmatprep.subr.mxu0 %v130
    %208 = vmatpush1.msra.mxu0 %v129
    %209 = vmatprep.subr.mxu0 %v132
    %210 = vmatpush1.msra.mxu0 %v131
    %211 = vmatprep.subr.mxu0 %v134
    %212 = vmatpush1.msra.mxu0 %v133
    %213 = vmatprep.subr.mxu0 %v136
    %214 = vmatpush1.msra.mxu0 %v135
    %215 = vmatprep.subr.mxu0 %v138
    %216 = vmatpush1.msra.mxu0 %v137
    %217 = vmatprep.subr.mxu0 %v140
    %218 = vmatpush1.msra.mxu0 %v139
    %219 = vmatprep.subr.mxu0 0.0
    %220 = vmatpush1.msra.mxu0 0.0
    %221 = vmatprep.subr.mxu0 0.0
    %222 = vmatpush1.msra.mxu0 0.0
    %223 = vmatprep.subr.mxu0 0.0
    %224 = vmatpush1.msra.mxu0 0.0
    %225 = vmatprep.subr.mxu0 0.0
    %226 = vmatpush1.msra.mxu0 0.0
    %227 = vmatprep.subr.mxu0 0.0
    %228 = vmatpush1.msra.mxu0 0.0
    %229 = vmatprep.subr.mxu0 0.0
    %230 = vmatpush1.msra.mxu0 0.0
    %231 = vmatprep.subr.mxu0 0.0
    %232 = vmatpush1.msra.mxu0 0.0
    %233 = vmatprep.subr.mxu0 0.0
    %234 = vmatpush1.msra.mxu0 0.0
    %235 = vmatprep.subr.mxu0 0.0
    %236 = vmatpush1.msra.mxu0 0.0
    %237 = vmatprep.subr.mxu0 0.0
    %238 = vmatpush1.msra.mxu0 0.0
    %239 = vmatprep.subr.mxu0 0.0
    %240 = vmatpush1.msra.mxu0 0.0
    %241 = vmatprep.subr.mxu0 0.0
    %242 = vmatpush1.msra.mxu0 0.0
    %243 = vmatprep.subr.mxu0 0.0
    %244 = vmatpush1.msra.mxu0 0.0
    %245 = vmatprep.subr.mxu0 0.0
    %246 = vmatpush1.msra.mxu0 0.0
    %247 = vmatprep.subr.mxu0 0.0
    %248 = vmatpush1.msra.mxu0 0.0
    %249 = vmatprep.subr.mxu0 0.0
    %250 = vmatpush1.msra.mxu0 0.0
    %251 = vmatprep.subr.mxu0 0.0
    %252 = vmatpush1.msra.mxu0 0.0
    %253 = vmatprep.subr.mxu0 0.0
    %254 = vmatpush1.msra.mxu0 0.0
    %255 = vmatprep.subr.mxu0 0.0
    %256 = vmatpush1.msra.mxu0 0.0
    %257 = vmatprep.subr.mxu0 0.0
    %258 = vmatpush1.msra.mxu0 0.0
    %259 = vmatprep.subr.mxu0 0.0
    %260 = vmatpush1.msra.mxu0 0.0
    %261 = vmatprep.subr.mxu0 0.0
    %262 = vmatpush1.msra.mxu0 0.0
    %263 = vmatprep.subr.mxu0 0.0
    %264 = vmatpush1.msra.mxu0 0.0
    %265 = vmatprep.subr.mxu0 0.0
    %266 = vmatpush1.msra.mxu0 0.0
    %267 = vmatprep.mubr.f32.mxu0 0.0
    %268 = vmatmul.mubr.f32.gmra.mrb[0].mxu0 %v180
    %v269 = vpop.f32.mrb[0].mxu0
    %v270 = vadd.f32 %v171, %v269
    %v271 = vpop.f32.mrb[0].mxu0
    %v272 = vadd.f32 %v175, %v271
    %273 = vmatprep.mubr.f32.mxu0 0.0
    %274 = vmatmul.mubr.f32.gmra.mrb[0].mxu0 %v183
    %v275 = vpop.f32.mrb[0].mxu0
    %v276 = vadd.f32 %v171, %v275
    %v277 = vpop.f32.mrb[0].mxu0
    %v278 = vadd.f32 %v175, %v277
    %279 = vmatprep.mubr.f32.mxu0 0.0
    %280 = vmatmul.mubr.f32.gmra.mrb[0].mxu0 %v186
    %v281 = vpop.f32.mrb[0].mxu0
    %v282 = vadd.f32 %v171, %v281
    %v283 = vpop.f32.mrb[0].mxu0
    %v284 = vadd.f32 %v175, %v283
    %285 = vmatprep.mubr.f32.mxu0 0.0
    %286 = vmatmul.mubr.f32.gmra.mrb[0].mxu0 %v189
    %v287 = vpop.f32.mrb[0].mxu0
    %v288 = vadd.f32 %v171, %v287
    %v289 = vpop.f32.mrb[0].mxu0
    %v290 = vadd.f32 %v175, %v289
    %291 = vmatprep.mubr.f32.mxu0 0.0
    %292 = vmatmul.mubr.f32.gmra.mrb[0].mxu0 %v192
    %v293 = vpop.f32.mrb[0].mxu0
    %v294 = vadd.f32 %v171, %v293
    %v295 = vpop.f32.mrb[0].mxu0
    %v296 = vadd.f32 %v175, %v295
    %297 = vmatprep.mubr.f32.mxu0 0.0
    %298 = vmatmul.mubr.f32.gmra.mrb[0].mxu0 %v195
    %v299 = vpop.f32.mrb[0].mxu0
    %v300 = vadd.f32 %v171, %v299
    %v301 = vpop.f32.mrb[0].mxu0
    %v302 = vadd.f32 %v175, %v301
    %303 = vmatprep.mubr.f32.mxu0 0.0
    %304 = vmatmul.mubr.f32.gmra.mrb[0].mxu0 %v198
    %v305 = vpop.f32.mrb[0].mxu0
    %v306 = vadd.f32 %v171, %v305
    %v307 = vpop.f32.mrb[0].mxu0
    %v308 = vadd.f32 %v175, %v307
    %309 = vmatprep.mubr.f32.mxu0 0.0
    %310 = vmatmul.mubr.f32.gmra.mrb[0].mxu0 %v201
    %v311 = vpop.f32.mrb[0].mxu0
    %v312 = vadd.f32 %v171, %v311
    %v313 = vpop.f32.mrb[0].mxu0
    %v314 = vadd.f32 %v175, %v313
    %315 = vdwg.mxu0
    %v316 = vmax.f32 %v270, 0.0
    %v317 = vmax.f32 %v276, 0.0
    %v318 = vmax.f32 %v282, 0.0
    %v319 = vmax.f32 %v288, 0.0
    %v320 = vmax.f32 %v294, 0.0
    %v321 = vmax.f32 %v300, 0.0
    %v322 = vmax.f32 %v306, 0.0
    %v323 = vmax.f32 %v312, 0.0
    %v324 = vmax.f32 %v272, 0.0
    %v325 = vmax.f32 %v278, 0.0
    %v326 = vmax.f32 %v284, 0.0
    %v327 = vmax.f32 %v290, 0.0
    %v328 = vmax.f32 %v296, 0.0
    %v329 = vmax.f32 %v302, 0.0
    %v330 = vmax.f32 %v308, 0.0
    %v331 = vmax.f32 %v314, 0.0
    %vm332 = vcmask 261120
    %v334 = vsel %vm332, %v324, 0
    %v337 = vsel %vm332, %v325, 0
    %v340 = vsel %vm332, %v326, 0
    %v343 = vsel %vm332, %v327, 0
    %v346 = vsel %vm332, %v328, 0
    %v349 = vsel %vm332, %v329, 0
    %v352 = vsel %vm332, %v330, 0
    %v355 = vsel %vm332, %v331, 0
    %357 = vmatprep.subr.mxu0 0.0
    %358 = vmatpush1.msra.mxu0 %v146
    %359 = vmatprep.subr.mxu0 0.0
    %360 = vmatpush1.msra.mxu0 %v147
    %361 = vmatprep.subr.mxu0 0.0
    %362 = vmatpush1.msra.mxu0 %v148
    %363 = vmatprep.subr.mxu0 0.0
    %364 = vmatpush1.msra.mxu0 %v149
    %365 = vmatprep.subr.mxu0 0.0
    %366 = vmatpush1.msra.mxu0 0.0
    %367 = vmatprep.subr.mxu0 0.0
    %368 = vmatpush1.msra.mxu0 0.0
    %369 = vmatprep.subr.mxu0 0.0
    %370 = vmatpush1.msra.mxu0 0.0
    %371 = vmatprep.subr.mxu0 0.0
    %372 = vmatpush1.msra.mxu0 0.0
    %373 = vmatprep.subr.mxu0 0.0
    %374 = vmatpush1.msra.mxu0 0.0
    %375 = vmatprep.subr.mxu0 0.0
    %376 = vmatpush1.msra.mxu0 0.0
    %377 = vmatprep.subr.mxu0 0.0
    %378 = vmatpush1.msra.mxu0 0.0
    %379 = vmatprep.subr.mxu0 0.0
    %380 = vmatpush1.msra.mxu0 0.0
    %381 = vmatprep.subr.mxu0 0.0
    %382 = vmatpush1.msra.mxu0 0.0
    %383 = vmatprep.subr.mxu0 0.0
    %384 = vmatpush1.msra.mxu0 0.0
    %385 = vmatprep.subr.mxu0 0.0
    %386 = vmatpush1.msra.mxu0 0.0
    %387 = vmatprep.subr.mxu0 0.0
    %388 = vmatpush1.msra.mxu0 0.0
    %389 = vmatprep.subr.mxu0 0.0
    %390 = vmatpush1.msra.mxu0 0.0
    %391 = vmatprep.subr.mxu0 0.0
    %392 = vmatpush1.msra.mxu0 0.0
    %393 = vmatprep.subr.mxu0 0.0
    %394 = vmatpush1.msra.mxu0 0.0
    %395 = vmatprep.subr.mxu0 0.0
    %396 = vmatpush1.msra.mxu0 0.0
    %397 = vmatprep.subr.mxu0 0.0
    %398 = vmatpush1.msra.mxu0 0.0
    %399 = vmatprep.subr.mxu0 0.0
    %400 = vmatpush1.msra.mxu0 0.0
    %401 = vmatprep.subr.mxu0 0.0
    %402 = vmatpush1.msra.mxu0 0.0
    %403 = vmatprep.subr.mxu0 0.0
    %404 = vmatpush1.msra.mxu0 0.0
    %405 = vmatprep.subr.mxu0 0.0
    %406 = vmatpush1.msra.mxu0 0.0
    %407 = vmatprep.subr.mxu0 0.0
    %408 = vmatpush1.msra.mxu0 0.0
    %409 = vmatprep.subr.mxu0 0.0
    %410 = vmatpush1.msra.mxu0 0.0
    %411 = vmatprep.subr.mxu0 0.0
    %412 = vmatpush1.msra.mxu0 0.0
    %413 = vmatprep.subr.mxu0 0.0
    %414 = vmatpush1.msra.mxu0 0.0
    %415 = vmatprep.subr.mxu0 0.0
    %416 = vmatpush1.msra.mxu0 0.0
    %417 = vmatprep.subr.mxu0 0.0
    %418 = vmatpush1.msra.mxu0 0.0
    %419 = vmatprep.subr.mxu0 0.0
    %420 = vmatpush1.msra.mxu0 0.0
    %421 = vmatprep.mubr.f32.mxu0 0.0
    %422 = vmatmul.mubr.f32.gmra.mrb[0].mxu0 %v334
    %v423 = vpop.f32.mrb[0].mxu0
    %v424 = vadd.f32 0.0, %v423
    %v425 = vpop.f32.mrb[0].mxu0
    %426 = vmatprep.mubr.f32.mxu0 0.0
    %427 = vmatmul.mubr.f32.gmra.mrb[0].mxu0 %v337
    %v428 = vpop.f32.mrb[0].mxu0
    %v429 = vadd.f32 0.0, %v428
    %v430 = vpop.f32.mrb[0].mxu0
    %431 = vmatprep.mubr.f32.mxu0 0.0
    %432 = vmatmul.mubr.f32.gmra.mrb[0].mxu0 %v340
    %v433 = vpop.f32.mrb[0].mxu0
    %v434 = vadd.f32 0.0, %v433
    %v435 = vpop.f32.mrb[0].mxu0
    %436 = vmatprep.mubr.f32.mxu0 0.0
    %437 = vmatmul.mubr.f32.gmra.mrb[0].mxu0 %v343
    %v438 = vpop.f32.mrb[0].mxu0
    %v439 = vadd.f32 0.0, %v438
    %v440 = vpop.f32.mrb[0].mxu0
    %441 = vmatprep.mubr.f32.mxu0 0.0
    %442 = vmatmul.mubr.f32.gmra.mrb[0].mxu0 %v346
    %v443 = vpop.f32.mrb[0].mxu0
    %v444 = vadd.f32 0.0, %v443
    %v445 = vpop.f32.mrb[0].mxu0
    %446 = vmatprep.mubr.f32.mxu0 0.0
    %447 = vmatmul.mubr.f32.gmra.mrb[0].mxu0 %v349
    %v448 = vpop.f32.mrb[0].mxu0
    %v449 = vadd.f32 0.0, %v448
    %v450 = vpop.f32.mrb[0].mxu0
    %451 = vmatprep.mubr.f32.mxu0 0.0
    %452 = vmatmul.mubr.f32.gmra.mrb[0].mxu0 %v352
    %v453 = vpop.f32.mrb[0].mxu0
    %v454 = vadd.f32 0.0, %v453
    %v455 = vpop.f32.mrb[0].mxu0
    %456 = vmatprep.mubr.f32.mxu0 0.0
    %457 = vmatmul.mubr.f32.gmra.mrb[0].mxu0 %v355
    %v458 = vpop.f32.mrb[0].mxu0
    %v459 = vadd.f32 0.0, %v458
    %v460 = vpop.f32.mrb[0].mxu0
    %461 = vdwg.mxu0
    %470 = vrot.lane.b32.xlu0 %v316, 32
    %v471 = vpop.permute.xlu0 %470
    %472 = vrot.lane.b32.xlu0 %v317, 32
    %v473 = vpop.permute.xlu0 %472
    %474 = vrot.lane.b32.xlu0 %v318, 32
    %v475 = vpop.permute.xlu0 %474
    %476 = vrot.lane.b32.xlu0 %v319, 32
    %v477 = vpop.permute.xlu0 %476
    %478 = vrot.lane.b32.xlu0 %v320, 32
    %v479 = vpop.permute.xlu0 %478
    %480 = vrot.lane.b32.xlu0 %v321, 32
    %v481 = vpop.permute.xlu0 %480
    %482 = vrot.lane.b32.xlu0 %v322, 32
    %v483 = vpop.permute.xlu0 %482
    %484 = vrot.lane.b32.xlu0 %v323, 32
    %v485 = vpop.permute.xlu0 %484
    %v486 = vsel %vm332, %v471, 0
    %v488 = vsel %vm332, %v473, 0
    %v490 = vsel %vm332, %v475, 0
    %v492 = vsel %vm332, %v477, 0
    %v494 = vsel %vm332, %v479, 0
    %v496 = vsel %vm332, %v481, 0
    %v498 = vsel %vm332, %v483, 0
    %v500 = vsel %vm332, %v485, 0
    %502 = vmatprep.subr.mxu0 0.0
    %503 = vmatpush1.msra.mxu0 %v142
    %504 = vmatprep.subr.mxu0 0.0
    %505 = vmatpush1.msra.mxu0 %v143
    %506 = vmatprep.subr.mxu0 0.0
    %507 = vmatpush1.msra.mxu0 %v144
    %508 = vmatprep.subr.mxu0 0.0
    %509 = vmatpush1.msra.mxu0 %v145
    %510 = vmatprep.subr.mxu0 0.0
    %511 = vmatpush1.msra.mxu0 0.0
    %512 = vmatprep.subr.mxu0 0.0
    %513 = vmatpush1.msra.mxu0 0.0
    %514 = vmatprep.subr.mxu0 0.0
    %515 = vmatpush1.msra.mxu0 0.0
    %516 = vmatprep.subr.mxu0 0.0
    %517 = vmatpush1.msra.mxu0 0.0
    %518 = vmatprep.subr.mxu0 0.0
    %519 = vmatpush1.msra.mxu0 0.0
    %520 = vmatprep.subr.mxu0 0.0
    %521 = vmatpush1.msra.mxu0 0.0
    %522 = vmatprep.subr.mxu0 0.0
    %523 = vmatpush1.msra.mxu0 0.0
    %524 = vmatprep.subr.mxu0 0.0
    %525 = vmatpush1.msra.mxu0 0.0
    %526 = vmatprep.subr.mxu0 0.0
    %527 = vmatpush1.msra.mxu0 0.0
    %528 = vmatprep.subr.mxu0 0.0
    %529 = vmatpush1.msra.mxu0 0.0
    %530 = vmatprep.subr.mxu0 0.0
    %531 = vmatpush1.msra.mxu0 0.0
    %532 = vmatprep.subr.mxu0 0.0
    %533 = vmatpush1.msra.mxu0 0.0
    %534 = vmatprep.subr.mxu0 0.0
    %535 = vmatpush1.msra.mxu0 0.0
    %536 = vmatprep.subr.mxu0 0.0
    %537 = vmatpush1.msra.mxu0 0.0
    %538 = vmatprep.subr.mxu0 0.0
    %539 = vmatpush1.msra.mxu0 0.0
    %540 = vmatprep.subr.mxu0 0.0
    %541 = vmatpush1.msra.mxu0 0.0
    %542 = vmatprep.subr.mxu0 0.0
    %543 = vmatpush1.msra.mxu0 0.0
    %544 = vmatprep.subr.mxu0 0.0
    %545 = vmatpush1.msra.mxu0 0.0
    %546 = vmatprep.subr.mxu0 0.0
    %547 = vmatpush1.msra.mxu0 0.0
    %548 = vmatprep.subr.mxu0 0.0
    %549 = vmatpush1.msra.mxu0 0.0
    %550 = vmatprep.subr.mxu0 0.0
    %551 = vmatpush1.msra.mxu0 0.0
    %552 = vmatprep.subr.mxu0 0.0
    %553 = vmatpush1.msra.mxu0 0.0
    %554 = vmatprep.subr.mxu0 0.0
    %555 = vmatpush1.msra.mxu0 0.0
    %556 = vmatprep.subr.mxu0 0.0
    %557 = vmatpush1.msra.mxu0 0.0
    %558 = vmatprep.subr.mxu0 0.0
    %559 = vmatpush1.msra.mxu0 0.0
    %560 = vmatprep.subr.mxu0 0.0
    %561 = vmatpush1.msra.mxu0 0.0
    %562 = vmatprep.subr.mxu0 0.0
    %563 = vmatpush1.msra.mxu0 0.0
    %564 = vmatprep.subr.mxu0 0.0
    %565 = vmatpush1.msra.mxu0 0.0
    %566 = vmatprep.mubr.f32.mxu0 0.0
    %567 = vmatmul.mubr.f32.gmra.mrb[0].mxu0 %v486
    %v568 = vpop.f32.mrb[0].mxu0
    %v569 = vadd.f32 %v424, %v568
    %v570 = vpop.f32.mrb[0].mxu0
    %571 = vmatprep.mubr.f32.mxu0 0.0
    %572 = vmatmul.mubr.f32.gmra.mrb[0].mxu0 %v488
    %v573 = vpop.f32.mrb[0].mxu0
    %v574 = vadd.f32 %v429, %v573
    %v575 = vpop.f32.mrb[0].mxu0
    %576 = vmatprep.mubr.f32.mxu0 0.0
    %577 = vmatmul.mubr.f32.gmra.mrb[0].mxu0 %v490
    %v578 = vpop.f32.mrb[0].mxu0
    %v579 = vadd.f32 %v434, %v578
    %v580 = vpop.f32.mrb[0].mxu0
    %581 = vmatprep.mubr.f32.mxu0 0.0
    %582 = vmatmul.mubr.f32.gmra.mrb[0].mxu0 %v492
    %v583 = vpop.f32.mrb[0].mxu0
    %v584 = vadd.f32 %v439, %v583
    %v585 = vpop.f32.mrb[0].mxu0
    %586 = vmatprep.mubr.f32.mxu0 0.0
    %587 = vmatmul.mubr.f32.gmra.mrb[0].mxu0 %v494
    %v588 = vpop.f32.mrb[0].mxu0
    %v589 = vadd.f32 %v444, %v588
    %v590 = vpop.f32.mrb[0].mxu0
    %591 = vmatprep.mubr.f32.mxu0 0.0
    %592 = vmatmul.mubr.f32.gmra.mrb[0].mxu0 %v496
    %v593 = vpop.f32.mrb[0].mxu0
    %v594 = vadd.f32 %v449, %v593
    %v595 = vpop.f32.mrb[0].mxu0
    %596 = vmatprep.mubr.f32.mxu0 0.0
    %597 = vmatmul.mubr.f32.gmra.mrb[0].mxu0 %v498
    %v598 = vpop.f32.mrb[0].mxu0
    %v599 = vadd.f32 %v454, %v598
    %v600 = vpop.f32.mrb[0].mxu0
    %601 = vmatprep.mubr.f32.mxu0 0.0
    %602 = vmatmul.mubr.f32.gmra.mrb[0].mxu0 %v500
    %v603 = vpop.f32.mrb[0].mxu0
    %v604 = vadd.f32 %v459, %v603
    %v605 = vpop.f32.mrb[0].mxu0
    %606 = vdwg.mxu0
    %v608 = vlaneseq
    %v609 = vshrl.u32 %v608, 7
    %v610 = vsub.s32 0, %v609
    %v611 = vrot.slane %v150, %v610
    %v613 = vadd.f32 %v569, %v611
    %v614 = vadd.f32 %v574, %v611
    %v615 = vadd.f32 %v579, %v611
    %v616 = vadd.f32 %v584, %v611
    %v617 = vadd.f32 %v589, %v611
    %v618 = vadd.f32 %v594, %v611
    %v619 = vadd.f32 %v599, %v611
    %v620 = vadd.f32 %v604, %v611
    %v621 = vxor.u32 %v613, 2147483648
    %v622 = vxor.u32 %v614, 2147483648
    %v623 = vxor.u32 %v615, 2147483648
    %v624 = vxor.u32 %v616, 2147483648
    %v625 = vxor.u32 %v617, 2147483648
    %v626 = vxor.u32 %v618, 2147483648
    %v627 = vxor.u32 %v619, 2147483648
    %v628 = vxor.u32 %v620, 2147483648
    %v629 = vmul.f32 %v621, 1.442695
    %v630 = vpow.pop %v629
    %v631 = vmul.f32 %v622, 1.442695
    %v632 = vpow.pop %v631
    %v633 = vmul.f32 %v623, 1.442695
    %v634 = vpow.pop %v633
    %v635 = vmul.f32 %v624, 1.442695
    %v636 = vpow.pop %v635
    %v637 = vmul.f32 %v625, 1.442695
    %v638 = vpow.pop %v637
    %v639 = vmul.f32 %v626, 1.442695
    %v640 = vpow.pop %v639
    %v641 = vmul.f32 %v627, 1.442695
    %v642 = vpow.pop %v641
    %v643 = vmul.f32 %v628, 1.442695
    %v644 = vpow.pop %v643
    %v645 = vadd.f32 %v630, 1.0
    %v646 = vadd.f32 %v632, 1.0
    %v647 = vadd.f32 %v634, 1.0
    %v648 = vadd.f32 %v636, 1.0
    %v649 = vadd.f32 %v638, 1.0
    %v650 = vadd.f32 %v640, 1.0
    %v651 = vadd.f32 %v642, 1.0
    %v652 = vadd.f32 %v644, 1.0
    %v653 = vrcp.pop %v645
    %v654 = vmul.f32 1.0, %v653
    %v655 = vrcp.pop %v646
    %v656 = vmul.f32 1.0, %v655
    %v657 = vrcp.pop %v647
    %v658 = vmul.f32 1.0, %v657
    %v659 = vrcp.pop %v648
    %v660 = vmul.f32 1.0, %v659
    %v661 = vrcp.pop %v649
    %v662 = vmul.f32 1.0, %v661
    %v663 = vrcp.pop %v650
    %v664 = vmul.f32 1.0, %v663
    %v665 = vrcp.pop %v651
    %v666 = vmul.f32 1.0, %v665
    %v667 = vrcp.pop %v652
    %v668 = vmul.f32 1.0, %v667
    %v669 = vld [vmem:[#allocation2] sm:$0xff]
    %v671 = vsel %vm332, %v669, 0
    %673 = vmatprep.subr.mxu0 0.0
    %674 = vmatpush1.msra.mxu0 %v151
    %675 = vmatprep.subr.mxu0 0.0
    %676 = vmatpush1.msra.mxu0 %v152
    %677 = vmatprep.subr.mxu0 0.0
    %678 = vmatpush1.msra.mxu0 %v153
    %679 = vmatprep.subr.mxu0 0.0
    %680 = vmatpush1.msra.mxu0 %v154
    %681 = vmatprep.subr.mxu0 0.0
    %682 = vmatpush1.msra.mxu0 0.0
    %683 = vmatprep.subr.mxu0 0.0
    %684 = vmatpush1.msra.mxu0 0.0
    %685 = vmatprep.subr.mxu0 0.0
    %686 = vmatpush1.msra.mxu0 0.0
    %687 = vmatprep.subr.mxu0 0.0
    %688 = vmatpush1.msra.mxu0 0.0
    %689 = vmatprep.subr.mxu0 0.0
    %690 = vmatpush1.msra.mxu0 0.0
    %691 = vmatprep.subr.mxu0 0.0
    %692 = vmatpush1.msra.mxu0 0.0
    %693 = vmatprep.subr.mxu0 0.0
    %694 = vmatpush1.msra.mxu0 0.0
    %695 = vmatprep.subr.mxu0 0.0
    %696 = vmatpush1.msra.mxu0 0.0
    %697 = vmatprep.subr.mxu0 0.0
    %698 = vmatpush1.msra.mxu0 0.0
    %699 = vmatprep.subr.mxu0 0.0
    %700 = vmatpush1.msra.mxu0 0.0
    %701 = vmatprep.subr.mxu0 0.0
    %702 = vmatpush1.msra.mxu0 0.0
    %703 = vmatprep.subr.mxu0 0.0
    %704 = vmatpush1.msra.mxu0 0.0
    %705 = vmatprep.subr.mxu0 0.0
    %706 = vmatpush1.msra.mxu0 0.0
    %707 = vmatprep.subr.mxu0 0.0
    %708 = vmatpush1.msra.mxu0 0.0
    %709 = vmatprep.subr.mxu0 0.0
    %710 = vmatpush1.msra.mxu0 0.0
    %711 = vmatprep.subr.mxu0 0.0
    %712 = vmatpush1.msra.mxu0 0.0
    %713 = vmatprep.subr.mxu0 0.0
    %714 = vmatpush1.msra.mxu0 0.0
    %715 = vmatprep.subr.mxu0 0.0
    %716 = vmatpush1.msra.mxu0 0.0
    %717 = vmatprep.subr.mxu0 0.0
    %718 = vmatpush1.msra.mxu0 0.0
    %719 = vmatprep.subr.mxu0 0.0
    %720 = vmatpush1.msra.mxu0 0.0
    %721 = vmatprep.subr.mxu0 0.0
    %722 = vmatpush1.msra.mxu0 0.0
    %723 = vmatprep.subr.mxu0 0.0
    %724 = vmatpush1.msra.mxu0 0.0
    %725 = vmatprep.subr.mxu0 0.0
    %726 = vmatpush1.msra.mxu0 0.0
    %727 = vmatprep.subr.mxu0 0.0
    %728 = vmatpush1.msra.mxu0 0.0
    %729 = vmatprep.subr.mxu0 0.0
    %730 = vmatpush1.msra.mxu0 0.0
    %731 = vmatprep.subr.mxu0 0.0
    %732 = vmatpush1.msra.mxu0 0.0
    %733 = vmatprep.subr.mxu0 0.0
    %734 = vmatpush1.msra.mxu0 0.0
    %735 = vmatprep.subr.mxu0 0.0
    %736 = vmatpush1.msra.mxu0 0.0
    %737 = vmatprep.mubr.f32.mxu0 0.0
    %738 = vmatmul.mubr.f32.gmra.mrb[0].mxu0 %v671
    %v739 = vpop.f32.mrb[0].mxu0
    %v740 = vadd.f32 0.0, %v739
    %v741 = vpop.f32.mrb[0].mxu0
    %742 = vdwg.mxu0
    %v743 = vadd.f32 %v270, %v740
    %v744 = vxor.u32 %v743, 2147483648
    %v745 = vmul.f32 %v744, 1.442695
    %v746 = vpow.pop %v745
    %v747 = vadd.f32 %v746, 1.0
    %v748 = vrcp.pop %v747
    %v749 = vmul.f32 1.0, %v748
    %v750 = vmul.f32 %v749, %v669
    %v752 = vsel %vm332, %v750, 0
    %754 = vmatprep.subr.mxu0 0.0
    %755 = vmatpush1.msra.mxu0 %v155
    %756 = vmatprep.subr.mxu0 0.0
    %757 = vmatpush1.msra.mxu0 %v156
    %758 = vmatprep.subr.mxu0 0.0
    %759 = vmatpush1.msra.mxu0 %v157
    %760 = vmatprep.subr.mxu0 0.0
    %761 = vmatpush1.msra.mxu0 %v158
    %762 = vmatprep.subr.mxu0 0.0
    %763 = vmatpush1.msra.mxu0 0.0
    %764 = vmatprep.subr.mxu0 0.0
    %765 = vmatpush1.msra.mxu0 0.0
    %766 = vmatprep.subr.mxu0 0.0
    %767 = vmatpush1.msra.mxu0 0.0
    %768 = vmatprep.subr.mxu0 0.0
    %769 = vmatpush1.msra.mxu0 0.0
    %770 = vmatprep.subr.mxu0 0.0
    %771 = vmatpush1.msra.mxu0 0.0
    %772 = vmatprep.subr.mxu0 0.0
    %773 = vmatpush1.msra.mxu0 0.0
    %774 = vmatprep.subr.mxu0 0.0
    %775 = vmatpush1.msra.mxu0 0.0
    %776 = vmatprep.subr.mxu0 0.0
    %777 = vmatpush1.msra.mxu0 0.0
    %778 = vmatprep.subr.mxu0 0.0
    %779 = vmatpush1.msra.mxu0 0.0
    %780 = vmatprep.subr.mxu0 0.0
    %781 = vmatpush1.msra.mxu0 0.0
    %782 = vmatprep.subr.mxu0 0.0
    %783 = vmatpush1.msra.mxu0 0.0
    %784 = vmatprep.subr.mxu0 0.0
    %785 = vmatpush1.msra.mxu0 0.0
    %786 = vmatprep.subr.mxu0 0.0
    %787 = vmatpush1.msra.mxu0 0.0
    %788 = vmatprep.subr.mxu0 0.0
    %789 = vmatpush1.msra.mxu0 0.0
    %790 = vmatprep.subr.mxu0 0.0
    %791 = vmatpush1.msra.mxu0 0.0
    %792 = vmatprep.subr.mxu0 0.0
    %793 = vmatpush1.msra.mxu0 0.0
    %794 = vmatprep.subr.mxu0 0.0
    %795 = vmatpush1.msra.mxu0 0.0
    %796 = vmatprep.subr.mxu0 0.0
    %797 = vmatpush1.msra.mxu0 0.0
    %798 = vmatprep.subr.mxu0 0.0
    %799 = vmatpush1.msra.mxu0 0.0
    %800 = vmatprep.subr.mxu0 0.0
    %801 = vmatpush1.msra.mxu0 0.0
    %802 = vmatprep.subr.mxu0 0.0
    %803 = vmatpush1.msra.mxu0 0.0
    %804 = vmatprep.subr.mxu0 0.0
    %805 = vmatpush1.msra.mxu0 0.0
    %806 = vmatprep.subr.mxu0 0.0
    %807 = vmatpush1.msra.mxu0 0.0
    %808 = vmatprep.subr.mxu0 0.0
    %809 = vmatpush1.msra.mxu0 0.0
    %810 = vmatprep.subr.mxu0 0.0
    %811 = vmatpush1.msra.mxu0 0.0
    %812 = vmatprep.subr.mxu0 0.0
    %813 = vmatpush1.msra.mxu0 0.0
    %814 = vmatprep.subr.mxu0 0.0
    %815 = vmatpush1.msra.mxu0 0.0
    %816 = vmatprep.subr.mxu0 0.0
    %817 = vmatpush1.msra.mxu0 0.0
    %818 = vmatprep.mubr.f32.mxu0 0.0
    %819 = vmatmul.mubr.f32.gmra.mrb[0].mxu0 %v752
    %v820 = vpop.f32.mrb[0].mxu0
    %v821 = vadd.f32 0.0, %v820
    %v822 = vpop.f32.mrb[0].mxu0
    %823 = vdwg.mxu0
    %825 = vrot.lane.b32.xlu0 %v821, 64
    %v826 = vpop.permute.xlu0 %825
    %v828 = vadd.f32 %v270, %v826
    %v829 = vtanh.pop %v828
    %830 = vrot.lane.b32.xlu0 %v669, 32
    %v831 = vpop.permute.xlu0 %830
    %v833 = vmul.f32 %v749, %v831
    %v834 = vsub.f32 1.0, %v749
    %836 = vrot.lane.b32.xlu0 %v829, 96
    %v837 = vpop.permute.xlu0 %836
    %v839 = vmul.f32 %v834, %v837
    %841 = vrot.lane.b32.xlu0 %v654, 32
    %v842 = vpop.permute.xlu0 %841
    %v844 = vmul.f32 %v839, %v842
    %v845 = vadd.f32 %v833, %v844
    %847 = vrot.lane.b32.xlu0 %v845, 96
    %v848 = vpop.permute.xlu0 %847
    %v849 = vsel %vm332, %v848, 0
    %851 = vmatprep.subr.mxu0 0.0
    %852 = vmatpush1.msra.mxu0 %v151
    %853 = vmatprep.subr.mxu0 0.0
    %854 = vmatpush1.msra.mxu0 %v152
    %855 = vmatprep.subr.mxu0 0.0
    %856 = vmatpush1.msra.mxu0 %v153
    %857 = vmatprep.subr.mxu0 0.0
    %858 = vmatpush1.msra.mxu0 %v154
    %859 = vmatprep.subr.mxu0 0.0
    %860 = vmatpush1.msra.mxu0 0.0
    %861 = vmatprep.subr.mxu0 0.0
    %862 = vmatpush1.msra.mxu0 0.0
    %863 = vmatprep.subr.mxu0 0.0
    %864 = vmatpush1.msra.mxu0 0.0
    %865 = vmatprep.subr.mxu0 0.0
    %866 = vmatpush1.msra.mxu0 0.0
    %867 = vmatprep.subr.mxu0 0.0
    %868 = vmatpush1.msra.mxu0 0.0
    %869 = vmatprep.subr.mxu0 0.0
    %870 = vmatpush1.msra.mxu0 0.0
    %871 = vmatprep.subr.mxu0 0.0
    %872 = vmatpush1.msra.mxu0 0.0
    %873 = vmatprep.subr.mxu0 0.0
    %874 = vmatpush1.msra.mxu0 0.0
    %875 = vmatprep.subr.mxu0 0.0
    %876 = vmatpush1.msra.mxu0 0.0
    %877 = vmatprep.subr.mxu0 0.0
    %878 = vmatpush1.msra.mxu0 0.0
    %879 = vmatprep.subr.mxu0 0.0
    %880 = vmatpush1.msra.mxu0 0.0
    %881 = vmatprep.subr.mxu0 0.0
    %882 = vmatpush1.msra.mxu0 0.0
    %883 = vmatprep.subr.mxu0 0.0
    %884 = vmatpush1.msra.mxu0 0.0
    %885 = vmatprep.subr.mxu0 0.0
    %886 = vmatpush1.msra.mxu0 0.0
    %887 = vmatprep.subr.mxu0 0.0
    %888 = vmatpush1.msra.mxu0 0.0
    %889 = vmatprep.subr.mxu0 0.0
    %890 = vmatpush1.msra.mxu0 0.0
    %891 = vmatprep.subr.mxu0 0.0
    %892 = vmatpush1.msra.mxu0 0.0
    %893 = vmatprep.subr.mxu0 0.0
    %894 = vmatpush1.msra.mxu0 0.0
    %895 = vmatprep.subr.mxu0 0.0
    %896 = vmatpush1.msra.mxu0 0.0
    %897 = vmatprep.subr.mxu0 0.0
    %898 = vmatpush1.msra.mxu0 0.0
    %899 = vmatprep.subr.mxu0 0.0
    %900 = vmatpush1.msra.mxu0 0.0
    %901 = vmatprep.subr.mxu0 0.0
    %902 = vmatpush1.msra.mxu0 0.0
    %903 = vmatprep.subr.mxu0 0.0
    %904 = vmatpush1.msra.mxu0 0.0
    %905 = vmatprep.subr.mxu0 0.0
    %906 = vmatpush1.msra.mxu0 0.0
    %907 = vmatprep.subr.mxu0 0.0
    %908 = vmatpush1.msra.mxu0 0.0
    %909 = vmatprep.subr.mxu0 0.0
    %910 = vmatpush1.msra.mxu0 0.0
    %911 = vmatprep.subr.mxu0 0.0
    %912 = vmatpush1.msra.mxu0 0.0
    %913 = vmatprep.subr.mxu0 0.0
    %914 = vmatpush1.msra.mxu0 0.0
    %915 = vmatprep.mubr.f32.mxu0 0.0
    %916 = vmatmul.mubr.f32.gmra.mrb[0].mxu0 %v849
    %v917 = vpop.f32.mrb[0].mxu0
    %v918 = vadd.f32 0.0, %v917
    %v919 = vpop.f32.mrb[0].mxu0
    %920 = vdwg.mxu0
    %v921 = vadd.f32 %v276, %v918
    %v922 = vxor.u32 %v921, 2147483648
    %v923 = vmul.f32 %v922, 1.442695
    %v924 = vpow.pop %v923
    %v925 = vadd.f32 %v924, 1.0
    %v926 = vrcp.pop %v925
    %v927 = vmul.f32 1.0, %v926
    %v929 = vmul.f32 %v927, %v848
    %v931 = vsel %vm332, %v929, 0
    %933 = vmatprep.subr.mxu0 0.0
    %934 = vmatpush1.msra.mxu0 %v155
    %935 = vmatprep.subr.mxu0 0.0
    %936 = vmatpush1.msra.mxu0 %v156
    %937 = vmatprep.subr.mxu0 0.0
    %938 = vmatpush1.msra.mxu0 %v157
    %939 = vmatprep.subr.mxu0 0.0
    %940 = vmatpush1.msra.mxu0 %v158
    %941 = vmatprep.subr.mxu0 0.0
    %942 = vmatpush1.msra.mxu0 0.0
    %943 = vmatprep.subr.mxu0 0.0
    %944 = vmatpush1.msra.mxu0 0.0
    %945 = vmatprep.subr.mxu0 0.0
    %946 = vmatpush1.msra.mxu0 0.0
    %947 = vmatprep.subr.mxu0 0.0
    %948 = vmatpush1.msra.mxu0 0.0
    %949 = vmatprep.subr.mxu0 0.0
    %950 = vmatpush1.msra.mxu0 0.0
    %951 = vmatprep.subr.mxu0 0.0
    %952 = vmatpush1.msra.mxu0 0.0
    %953 = vmatprep.subr.mxu0 0.0
    %954 = vmatpush1.msra.mxu0 0.0
    %955 = vmatprep.subr.mxu0 0.0
    %956 = vmatpush1.msra.mxu0 0.0
    %957 = vmatprep.subr.mxu0 0.0
    %958 = vmatpush1.msra.mxu0 0.0
    %959 = vmatprep.subr.mxu0 0.0
    %960 = vmatpush1.msra.mxu0 0.0
    %961 = vmatprep.subr.mxu0 0.0
    %962 = vmatpush1.msra.mxu0 0.0
    %963 = vmatprep.subr.mxu0 0.0
    %964 = vmatpush1.msra.mxu0 0.0
    %965 = vmatprep.subr.mxu0 0.0
    %966 = vmatpush1.msra.mxu0 0.0
    %967 = vmatprep.subr.mxu0 0.0
    %968 = vmatpush1.msra.mxu0 0.0
    %969 = vmatprep.subr.mxu0 0.0
    %970 = vmatpush1.msra.mxu0 0.0
    %971 = vmatprep.subr.mxu0 0.0
    %972 = vmatpush1.msra.mxu0 0.0
    %973 = vmatprep.subr.mxu0 0.0
    %974 = vmatpush1.msra.mxu0 0.0
    %975 = vmatprep.subr.mxu0 0.0
    %976 = vmatpush1.msra.mxu0 0.0
    %977 = vmatprep.subr.mxu0 0.0
    %978 = vmatpush1.msra.mxu0 0.0
    %979 = vmatprep.subr.mxu0 0.0
    %980 = vmatpush1.msra.mxu0 0.0
    %981 = vmatprep.subr.mxu0 0.0
    %982 = vmatpush1.msra.mxu0 0.0
    %983 = vmatprep.subr.mxu0 0.0
    %984 = vmatpush1.msra.mxu0 0.0
    %985 = vmatprep.subr.mxu0 0.0
    %986 = vmatpush1.msra.mxu0 0.0
    %987 = vmatprep.subr.mxu0 0.0
    %988 = vmatpush1.msra.mxu0 0.0
    %989 = vmatprep.subr.mxu0 0.0
    %990 = vmatpush1.msra.mxu0 0.0
    %991 = vmatprep.subr.mxu0 0.0
    %992 = vmatpush1.msra.mxu0 0.0
    %993 = vmatprep.subr.mxu0 0.0
    %994 = vmatpush1.msra.mxu0 0.0
    %995 = vmatprep.subr.mxu0 0.0
    %996 = vmatpush1.msra.mxu0 0.0
    %997 = vmatprep.mubr.f32.mxu0 0.0
    %998 = vmatmul.mubr.f32.gmra.mrb[0].mxu0 %v931
    %v999 = vpop.f32.mrb[0].mxu0
    %v1000 = vadd.f32 0.0, %v999
    %v1001 = vpop.f32.mrb[0].mxu0
    %1002 = vdwg.mxu0
    %1004 = vrot.lane.b32.xlu0 %v1000, 64
    %v1005 = vpop.permute.xlu0 %1004
    %v1007 = vadd.f32 %v276, %v1005
    %v1008 = vtanh.pop %v1007
    %v1009 = vmul.f32 %v927, %v845
    %v1010 = vsub.f32 1.0, %v927
    %1012 = vrot.lane.b32.xlu0 %v1008, 96
    %v1013 = vpop.permute.xlu0 %1012
    %v1015 = vmul.f32 %v1010, %v1013
    %1017 = vrot.lane.b32.xlu0 %v656, 32
    %v1018 = vpop.permute.xlu0 %1017
    %v1020 = vmul.f32 %v1015, %v1018
    %v1021 = vadd.f32 %v1009, %v1020
    %1023 = vrot.lane.b32.xlu0 %v1021, 96
    %v1024 = vpop.permute.xlu0 %1023
    %v1025 = vsel %vm332, %v1024, 0
    %1027 = vmatprep.subr.mxu0 0.0
    %1028 = vmatpush1.msra.mxu0 %v151
    %1029 = vmatprep.subr.mxu0 0.0
    %1030 = vmatpush1.msra.mxu0 %v152
    %1031 = vmatprep.subr.mxu0 0.0
    %1032 = vmatpush1.msra.mxu0 %v153
    %1033 = vmatprep.subr.mxu0 0.0
    %1034 = vmatpush1.msra.mxu0 %v154
    %1035 = vmatprep.subr.mxu0 0.0
    %1036 = vmatpush1.msra.mxu0 0.0
    %1037 = vmatprep.subr.mxu0 0.0
    %1038 = vmatpush1.msra.mxu0 0.0
    %1039 = vmatprep.subr.mxu0 0.0
    %1040 = vmatpush1.msra.mxu0 0.0
    %1041 = vmatprep.subr.mxu0 0.0
    %1042 = vmatpush1.msra.mxu0 0.0
    %1043 = vmatprep.subr.mxu0 0.0
    %1044 = vmatpush1.msra.mxu0 0.0
    %1045 = vmatprep.subr.mxu0 0.0
    %1046 = vmatpush1.msra.mxu0 0.0
    %1047 = vmatprep.subr.mxu0 0.0
    %1048 = vmatpush1.msra.mxu0 0.0
    %1049 = vmatprep.subr.mxu0 0.0
    %1050 = vmatpush1.msra.mxu0 0.0
    %1051 = vmatprep.subr.mxu0 0.0
    %1052 = vmatpush1.msra.mxu0 0.0
    %1053 = vmatprep.subr.mxu0 0.0
    %1054 = vmatpush1.msra.mxu0 0.0
    %1055 = vmatprep.subr.mxu0 0.0
    %1056 = vmatpush1.msra.mxu0 0.0
    %1057 = vmatprep.subr.mxu0 0.0
    %1058 = vmatpush1.msra.mxu0 0.0
    %1059 = vmatprep.subr.mxu0 0.0
    %1060 = vmatpush1.msra.mxu0 0.0
    %1061 = vmatprep.subr.mxu0 0.0
    %1062 = vmatpush1.msra.mxu0 0.0
    %1063 = vmatprep.subr.mxu0 0.0
    %1064 = vmatpush1.msra.mxu0 0.0
    %1065 = vmatprep.subr.mxu0 0.0
    %1066 = vmatpush1.msra.mxu0 0.0
    %1067 = vmatprep.subr.mxu0 0.0
    %1068 = vmatpush1.msra.mxu0 0.0
    %1069 = vmatprep.subr.mxu0 0.0
    %1070 = vmatpush1.msra.mxu0 0.0
    %1071 = vmatprep.subr.mxu0 0.0
    %1072 = vmatpush1.msra.mxu0 0.0
    %1073 = vmatprep.subr.mxu0 0.0
    %1074 = vmatpush1.msra.mxu0 0.0
    %1075 = vmatprep.subr.mxu0 0.0
    %1076 = vmatpush1.msra.mxu0 0.0
    %1077 = vmatprep.subr.mxu0 0.0
    %1078 = vmatpush1.msra.mxu0 0.0
    %1079 = vmatprep.subr.mxu0 0.0
    %1080 = vmatpush1.msra.mxu0 0.0
    %1081 = vmatprep.subr.mxu0 0.0
    %1082 = vmatpush1.msra.mxu0 0.0
    %1083 = vmatprep.subr.mxu0 0.0
    %1084 = vmatpush1.msra.mxu0 0.0
    %1085 = vmatprep.subr.mxu0 0.0
    %1086 = vmatpush1.msra.mxu0 0.0
    %1087 = vmatprep.subr.mxu0 0.0
    %1088 = vmatpush1.msra.mxu0 0.0
    %1089 = vmatprep.subr.mxu0 0.0
    %1090 = vmatpush1.msra.mxu0 0.0
    %1091 = vmatprep.mubr.f32.mxu0 0.0
    %1092 = vmatmul.mubr.f32.gmra.mrb[0].mxu0 %v1025
    %v1093 = vpop.f32.mrb[0].mxu0
    %v1094 = vadd.f32 0.0, %v1093
    %v1095 = vpop.f32.mrb[0].mxu0
    %1096 = vdwg.mxu0
    %v1097 = vadd.f32 %v282, %v1094
    %v1098 = vxor.u32 %v1097, 2147483648
    %v1099 = vmul.f32 %v1098, 1.442695
    %v1100 = vpow.pop %v1099
    %v1101 = vadd.f32 %v1100, 1.0
    %v1102 = vrcp.pop %v1101
    %v1103 = vmul.f32 1.0, %v1102
    %v1105 = vmul.f32 %v1103, %v1024
    %v1107 = vsel %vm332, %v1105, 0
    %1109 = vmatprep.subr.mxu0 0.0
    %1110 = vmatpush1.msra.mxu0 %v155
    %1111 = vmatprep.subr.mxu0 0.0
    %1112 = vmatpush1.msra.mxu0 %v156
    %1113 = vmatprep.subr.mxu0 0.0
    %1114 = vmatpush1.msra.mxu0 %v157
    %1115 = vmatprep.subr.mxu0 0.0
    %1116 = vmatpush1.msra.mxu0 %v158
    %1117 = vmatprep.subr.mxu0 0.0
    %1118 = vmatpush1.msra.mxu0 0.0
    %1119 = vmatprep.subr.mxu0 0.0
    %1120 = vmatpush1.msra.mxu0 0.0
    %1121 = vmatprep.subr.mxu0 0.0
    %1122 = vmatpush1.msra.mxu0 0.0
    %1123 = vmatprep.subr.mxu0 0.0
    %1124 = vmatpush1.msra.mxu0 0.0
    %1125 = vmatprep.subr.mxu0 0.0
    %1126 = vmatpush1.msra.mxu0 0.0
    %1127 = vmatprep.subr.mxu0 0.0
    %1128 = vmatpush1.msra.mxu0 0.0
    %1129 = vmatprep.subr.mxu0 0.0
    %1130 = vmatpush1.msra.mxu0 0.0
    %1131 = vmatprep.subr.mxu0 0.0
    %1132 = vmatpush1.msra.mxu0 0.0
    %1133 = vmatprep.subr.mxu0 0.0
    %1134 = vmatpush1.msra.mxu0 0.0
    %1135 = vmatprep.subr.mxu0 0.0
    %1136 = vmatpush1.msra.mxu0 0.0
    %1137 = vmatprep.subr.mxu0 0.0
    %1138 = vmatpush1.msra.mxu0 0.0
    %1139 = vmatprep.subr.mxu0 0.0
    %1140 = vmatpush1.msra.mxu0 0.0
    %1141 = vmatprep.subr.mxu0 0.0
    %1142 = vmatpush1.msra.mxu0 0.0
    %1143 = vmatprep.subr.mxu0 0.0
    %1144 = vmatpush1.msra.mxu0 0.0
    %1145 = vmatprep.subr.mxu0 0.0
    %1146 = vmatpush1.msra.mxu0 0.0
    %1147 = vmatprep.subr.mxu0 0.0
    %1148 = vmatpush1.msra.mxu0 0.0
    %1149 = vmatprep.subr.mxu0 0.0
    %1150 = vmatpush1.msra.mxu0 0.0
    %1151 = vmatprep.subr.mxu0 0.0
    %1152 = vmatpush1.msra.mxu0 0.0
    %1153 = vmatprep.subr.mxu0 0.0
    %1154 = vmatpush1.msra.mxu0 0.0
    %1155 = vmatprep.subr.mxu0 0.0
    %1156 = vmatpush1.msra.mxu0 0.0
    %1157 = vmatprep.subr.mxu0 0.0
    %1158 = vmatpush1.msra.mxu0 0.0
    %1159 = vmatprep.subr.mxu0 0.0
    %1160 = vmatpush1.msra.mxu0 0.0
    %1161 = vmatprep.subr.mxu0 0.0
    %1162 = vmatpush1.msra.mxu0 0.0
    %1163 = vmatprep.subr.mxu0 0.0
    %1164 = vmatpush1.msra.mxu0 0.0
    %1165 = vmatprep.subr.mxu0 0.0
    %1166 = vmatpush1.msra.mxu0 0.0
    %1167 = vmatprep.subr.mxu0 0.0
    %1168 = vmatpush1.msra.mxu0 0.0
    %1169 = vmatprep.subr.mxu0 0.0
    %1170 = vmatpush1.msra.mxu0 0.0
    %1171 = vmatprep.subr.mxu0 0.0
    %1172 = vmatpush1.msra.mxu0 0.0
    %1173 = vmatprep.mubr.f32.mxu0 0.0
    %1174 = vmatmul.mubr.f32.gmra.mrb[0].mxu0 %v1107
    %v1175 = vpop.f32.mrb[0].mxu0
    %v1176 = vadd.f32 0.0, %v1175
    %v1177 = vpop.f32.mrb[0].mxu0
    %1178 = vdwg.mxu0
    %1180 = vrot.lane.b32.xlu0 %v1176, 64
    %v1181 = vpop.permute.xlu0 %1180
    %v1183 = vadd.f32 %v282, %v1181
    %v1184 = vtanh.pop %v1183
    %v1185 = vmul.f32 %v1103, %v1021
    %v1186 = vsub.f32 1.0, %v1103
    %1188 = vrot.lane.b32.xlu0 %v1184, 96
    %v1189 = vpop.permute.xlu0 %1188
    %v1191 = vmul.f32 %v1186, %v1189
    %1193 = vrot.lane.b32.xlu0 %v658, 32
    %v1194 = vpop.permute.xlu0 %1193
    %v1196 = vmul.f32 %v1191, %v1194
    %v1197 = vadd.f32 %v1185, %v1196
    %1199 = vrot.lane.b32.xlu0 %v1197, 96
    %v1200 = vpop.permute.xlu0 %1199
    %v1201 = vsel %vm332, %v1200, 0
    %1203 = vmatprep.subr.mxu0 0.0
    %1204 = vmatpush1.msra.mxu0 %v151
    %1205 = vmatprep.subr.mxu0 0.0
    %1206 = vmatpush1.msra.mxu0 %v152
    %1207 = vmatprep.subr.mxu0 0.0
    %1208 = vmatpush1.msra.mxu0 %v153
    %1209 = vmatprep.subr.mxu0 0.0
    %1210 = vmatpush1.msra.mxu0 %v154
    %1211 = vmatprep.subr.mxu0 0.0
    %1212 = vmatpush1.msra.mxu0 0.0
    %1213 = vmatprep.subr.mxu0 0.0
    %1214 = vmatpush1.msra.mxu0 0.0
    %1215 = vmatprep.subr.mxu0 0.0
    %1216 = vmatpush1.msra.mxu0 0.0
    %1217 = vmatprep.subr.mxu0 0.0
    %1218 = vmatpush1.msra.mxu0 0.0
    %1219 = vmatprep.subr.mxu0 0.0
    %1220 = vmatpush1.msra.mxu0 0.0
    %1221 = vmatprep.subr.mxu0 0.0
    %1222 = vmatpush1.msra.mxu0 0.0
    %1223 = vmatprep.subr.mxu0 0.0
    %1224 = vmatpush1.msra.mxu0 0.0
    %1225 = vmatprep.subr.mxu0 0.0
    %1226 = vmatpush1.msra.mxu0 0.0
    %1227 = vmatprep.subr.mxu0 0.0
    %1228 = vmatpush1.msra.mxu0 0.0
    %1229 = vmatprep.subr.mxu0 0.0
    %1230 = vmatpush1.msra.mxu0 0.0
    %1231 = vmatprep.subr.mxu0 0.0
    %1232 = vmatpush1.msra.mxu0 0.0
    %1233 = vmatprep.subr.mxu0 0.0
    %1234 = vmatpush1.msra.mxu0 0.0
    %1235 = vmatprep.subr.mxu0 0.0
    %1236 = vmatpush1.msra.mxu0 0.0
    %1237 = vmatprep.subr.mxu0 0.0
    %1238 = vmatpush1.msra.mxu0 0.0
    %1239 = vmatprep.subr.mxu0 0.0
    %1240 = vmatpush1.msra.mxu0 0.0
    %1241 = vmatprep.subr.mxu0 0.0
    %1242 = vmatpush1.msra.mxu0 0.0
    %1243 = vmatprep.subr.mxu0 0.0
    %1244 = vmatpush1.msra.mxu0 0.0
    %1245 = vmatprep.subr.mxu0 0.0
    %1246 = vmatpush1.msra.mxu0 0.0
    %1247 = vmatprep.subr.mxu0 0.0
    %1248 = vmatpush1.msra.mxu0 0.0
    %1249 = vmatprep.subr.mxu0 0.0
    %1250 = vmatpush1.msra.mxu0 0.0
    %1251 = vmatprep.subr.mxu0 0.0
    %1252 = vmatpush1.msra.mxu0 0.0
    %1253 = vmatprep.subr.mxu0 0.0
    %1254 = vmatpush1.msra.mxu0 0.0
    %1255 = vmatprep.subr.mxu0 0.0
    %1256 = vmatpush1.msra.mxu0 0.0
    %1257 = vmatprep.subr.mxu0 0.0
    %1258 = vmatpush1.msra.mxu0 0.0
    %1259 = vmatprep.subr.mxu0 0.0
    %1260 = vmatpush1.msra.mxu0 0.0
    %1261 = vmatprep.subr.mxu0 0.0
    %1262 = vmatpush1.msra.mxu0 0.0
    %1263 = vmatprep.subr.mxu0 0.0
    %1264 = vmatpush1.msra.mxu0 0.0
    %1265 = vmatprep.subr.mxu0 0.0
    %1266 = vmatpush1.msra.mxu0 0.0
    %1267 = vmatprep.mubr.f32.mxu0 0.0
    %1268 = vmatmul.mubr.f32.gmra.mrb[0].mxu0 %v1201
    %v1269 = vpop.f32.mrb[0].mxu0
    %v1270 = vadd.f32 0.0, %v1269
    %v1271 = vpop.f32.mrb[0].mxu0
    %1272 = vdwg.mxu0
    %v1273 = vadd.f32 %v288, %v1270
    %v1274 = vxor.u32 %v1273, 2147483648
    %v1275 = vmul.f32 %v1274, 1.442695
    %v1276 = vpow.pop %v1275
    %v1277 = vadd.f32 %v1276, 1.0
    %v1278 = vrcp.pop %v1277
    %v1279 = vmul.f32 1.0, %v1278
    %v1281 = vmul.f32 %v1279, %v1200
    %v1283 = vsel %vm332, %v1281, 0
    %1285 = vmatprep.subr.mxu0 0.0
    %1286 = vmatpush1.msra.mxu0 %v155
    %1287 = vmatprep.subr.mxu0 0.0
    %1288 = vmatpush1.msra.mxu0 %v156
    %1289 = vmatprep.subr.mxu0 0.0
    %1290 = vmatpush1.msra.mxu0 %v157
    %1291 = vmatprep.subr.mxu0 0.0
    %1292 = vmatpush1.msra.mxu0 %v158
    %1293 = vmatprep.subr.mxu0 0.0
    %1294 = vmatpush1.msra.mxu0 0.0
    %1295 = vmatprep.subr.mxu0 0.0
    %1296 = vmatpush1.msra.mxu0 0.0
    %1297 = vmatprep.subr.mxu0 0.0
    %1298 = vmatpush1.msra.mxu0 0.0
    %1299 = vmatprep.subr.mxu0 0.0
    %1300 = vmatpush1.msra.mxu0 0.0
    %1301 = vmatprep.subr.mxu0 0.0
    %1302 = vmatpush1.msra.mxu0 0.0
    %1303 = vmatprep.subr.mxu0 0.0
    %1304 = vmatpush1.msra.mxu0 0.0
    %1305 = vmatprep.subr.mxu0 0.0
    %1306 = vmatpush1.msra.mxu0 0.0
    %1307 = vmatprep.subr.mxu0 0.0
    %1308 = vmatpush1.msra.mxu0 0.0
    %1309 = vmatprep.subr.mxu0 0.0
    %1310 = vmatpush1.msra.mxu0 0.0
    %1311 = vmatprep.subr.mxu0 0.0
    %1312 = vmatpush1.msra.mxu0 0.0
    %1313 = vmatprep.subr.mxu0 0.0
    %1314 = vmatpush1.msra.mxu0 0.0
    %1315 = vmatprep.subr.mxu0 0.0
    %1316 = vmatpush1.msra.mxu0 0.0
    %1317 = vmatprep.subr.mxu0 0.0
    %1318 = vmatpush1.msra.mxu0 0.0
    %1319 = vmatprep.subr.mxu0 0.0
    %1320 = vmatpush1.msra.mxu0 0.0
    %1321 = vmatprep.subr.mxu0 0.0
    %1322 = vmatpush1.msra.mxu0 0.0
    %1323 = vmatprep.subr.mxu0 0.0
    %1324 = vmatpush1.msra.mxu0 0.0
    %1325 = vmatprep.subr.mxu0 0.0
    %1326 = vmatpush1.msra.mxu0 0.0
    %1327 = vmatprep.subr.mxu0 0.0
    %1328 = vmatpush1.msra.mxu0 0.0
    %1329 = vmatprep.subr.mxu0 0.0
    %1330 = vmatpush1.msra.mxu0 0.0
    %1331 = vmatprep.subr.mxu0 0.0
    %1332 = vmatpush1.msra.mxu0 0.0
    %1333 = vmatprep.subr.mxu0 0.0
    %1334 = vmatpush1.msra.mxu0 0.0
    %1335 = vmatprep.subr.mxu0 0.0
    %1336 = vmatpush1.msra.mxu0 0.0
    %1337 = vmatprep.subr.mxu0 0.0
    %1338 = vmatpush1.msra.mxu0 0.0
    %1339 = vmatprep.subr.mxu0 0.0
    %1340 = vmatpush1.msra.mxu0 0.0
    %1341 = vmatprep.subr.mxu0 0.0
    %1342 = vmatpush1.msra.mxu0 0.0
    %1343 = vmatprep.subr.mxu0 0.0
    %1344 = vmatpush1.msra.mxu0 0.0
    %1345 = vmatprep.subr.mxu0 0.0
    %1346 = vmatpush1.msra.mxu0 0.0
    %1347 = vmatprep.subr.mxu0 0.0
    %1348 = vmatpush1.msra.mxu0 0.0
    %1349 = vmatprep.mubr.f32.mxu0 0.0
    %1350 = vmatmul.mubr.f32.gmra.mrb[0].mxu0 %v1283
    %v1351 = vpop.f32.mrb[0].mxu0
    %v1352 = vadd.f32 0.0, %v1351
    %v1353 = vpop.f32.mrb[0].mxu0
    %1354 = vdwg.mxu0
    %1356 = vrot.lane.b32.xlu0 %v1352, 64
    %v1357 = vpop.permute.xlu0 %1356
    %v1359 = vadd.f32 %v288, %v1357
    %v1360 = vtanh.pop %v1359
    %v1361 = vmul.f32 %v1279, %v1197
    %v1362 = vsub.f32 1.0, %v1279
    %1364 = vrot.lane.b32.xlu0 %v1360, 96
    %v1365 = vpop.permute.xlu0 %1364
    %v1367 = vmul.f32 %v1362, %v1365
    %1369 = vrot.lane.b32.xlu0 %v660, 32
    %v1370 = vpop.permute.xlu0 %1369
    %v1372 = vmul.f32 %v1367, %v1370
    %v1373 = vadd.f32 %v1361, %v1372
    %1375 = vrot.lane.b32.xlu0 %v1373, 96
    %v1376 = vpop.permute.xlu0 %1375
    %v1377 = vsel %vm332, %v1376, 0
    %1379 = vmatprep.subr.mxu0 0.0
    %1380 = vmatpush1.msra.mxu0 %v151
    %1381 = vmatprep.subr.mxu0 0.0
    %1382 = vmatpush1.msra.mxu0 %v152
    %1383 = vmatprep.subr.mxu0 0.0
    %1384 = vmatpush1.msra.mxu0 %v153
    %1385 = vmatprep.subr.mxu0 0.0
    %1386 = vmatpush1.msra.mxu0 %v154
    %1387 = vmatprep.subr.mxu0 0.0
    %1388 = vmatpush1.msra.mxu0 0.0
    %1389 = vmatprep.subr.mxu0 0.0
    %1390 = vmatpush1.msra.mxu0 0.0
    %1391 = vmatprep.subr.mxu0 0.0
    %1392 = vmatpush1.msra.mxu0 0.0
    %1393 = vmatprep.subr.mxu0 0.0
    %1394 = vmatpush1.msra.mxu0 0.0
    %1395 = vmatprep.subr.mxu0 0.0
    %1396 = vmatpush1.msra.mxu0 0.0
    %1397 = vmatprep.subr.mxu0 0.0
    %1398 = vmatpush1.msra.mxu0 0.0
    %1399 = vmatprep.subr.mxu0 0.0
    %1400 = vmatpush1.msra.mxu0 0.0
    %1401 = vmatprep.subr.mxu0 0.0
    %1402 = vmatpush1.msra.mxu0 0.0
    %1403 = vmatprep.subr.mxu0 0.0
    %1404 = vmatpush1.msra.mxu0 0.0
    %1405 = vmatprep.subr.mxu0 0.0
    %1406 = vmatpush1.msra.mxu0 0.0
    %1407 = vmatprep.subr.mxu0 0.0
    %1408 = vmatpush1.msra.mxu0 0.0
    %1409 = vmatprep.subr.mxu0 0.0
    %1410 = vmatpush1.msra.mxu0 0.0
    %1411 = vmatprep.subr.mxu0 0.0
    %1412 = vmatpush1.msra.mxu0 0.0
    %1413 = vmatprep.subr.mxu0 0.0
    %1414 = vmatpush1.msra.mxu0 0.0
    %1415 = vmatprep.subr.mxu0 0.0
    %1416 = vmatpush1.msra.mxu0 0.0
    %1417 = vmatprep.subr.mxu0 0.0
    %1418 = vmatpush1.msra.mxu0 0.0
    %1419 = vmatprep.subr.mxu0 0.0
    %1420 = vmatpush1.msra.mxu0 0.0
    %1421 = vmatprep.subr.mxu0 0.0
    %1422 = vmatpush1.msra.mxu0 0.0
    %1423 = vmatprep.subr.mxu0 0.0
    %1424 = vmatpush1.msra.mxu0 0.0
    %1425 = vmatprep.subr.mxu0 0.0
    %1426 = vmatpush1.msra.mxu0 0.0
    %1427 = vmatprep.subr.mxu0 0.0
    %1428 = vmatpush1.msra.mxu0 0.0
    %1429 = vmatprep.subr.mxu0 0.0
    %1430 = vmatpush1.msra.mxu0 0.0
    %1431 = vmatprep.subr.mxu0 0.0
    %1432 = vmatpush1.msra.mxu0 0.0
    %1433 = vmatprep.subr.mxu0 0.0
    %1434 = vmatpush1.msra.mxu0 0.0
    %1435 = vmatprep.subr.mxu0 0.0
    %1436 = vmatpush1.msra.mxu0 0.0
    %1437 = vmatprep.subr.mxu0 0.0
    %1438 = vmatpush1.msra.mxu0 0.0
    %1439 = vmatprep.subr.mxu0 0.0
    %1440 = vmatpush1.msra.mxu0 0.0
    %1441 = vmatprep.subr.mxu0 0.0
    %1442 = vmatpush1.msra.mxu0 0.0
    %1443 = vmatprep.mubr.f32.mxu0 0.0
    %1444 = vmatmul.mubr.f32.gmra.mrb[0].mxu0 %v1377
    %v1445 = vpop.f32.mrb[0].mxu0
    %v1446 = vadd.f32 0.0, %v1445
    %v1447 = vpop.f32.mrb[0].mxu0
    %1448 = vdwg.mxu0
    %v1449 = vadd.f32 %v294, %v1446
    %v1450 = vxor.u32 %v1449, 2147483648
    %v1451 = vmul.f32 %v1450, 1.442695
    %v1452 = vpow.pop %v1451
    %v1453 = vadd.f32 %v1452, 1.0
    %v1454 = vrcp.pop %v1453
    %v1455 = vmul.f32 1.0, %v1454
    %v1457 = vmul.f32 %v1455, %v1376
    %v1459 = vsel %vm332, %v1457, 0
    %1461 = vmatprep.subr.mxu0 0.0
    %1462 = vmatpush1.msra.mxu0 %v155
    %1463 = vmatprep.subr.mxu0 0.0
    %1464 = vmatpush1.msra.mxu0 %v156
    %1465 = vmatprep.subr.mxu0 0.0
    %1466 = vmatpush1.msra.mxu0 %v157
    %1467 = vmatprep.subr.mxu0 0.0
    %1468 = vmatpush1.msra.mxu0 %v158
    %1469 = vmatprep.subr.mxu0 0.0
    %1470 = vmatpush1.msra.mxu0 0.0
    %1471 = vmatprep.subr.mxu0 0.0
    %1472 = vmatpush1.msra.mxu0 0.0
    %1473 = vmatprep.subr.mxu0 0.0
    %1474 = vmatpush1.msra.mxu0 0.0
    %1475 = vmatprep.subr.mxu0 0.0
    %1476 = vmatpush1.msra.mxu0 0.0
    %1477 = vmatprep.subr.mxu0 0.0
    %1478 = vmatpush1.msra.mxu0 0.0
    %1479 = vmatprep.subr.mxu0 0.0
    %1480 = vmatpush1.msra.mxu0 0.0
    %1481 = vmatprep.subr.mxu0 0.0
    %1482 = vmatpush1.msra.mxu0 0.0
    %1483 = vmatprep.subr.mxu0 0.0
    %1484 = vmatpush1.msra.mxu0 0.0
    %1485 = vmatprep.subr.mxu0 0.0
    %1486 = vmatpush1.msra.mxu0 0.0
    %1487 = vmatprep.subr.mxu0 0.0
    %1488 = vmatpush1.msra.mxu0 0.0
    %1489 = vmatprep.subr.mxu0 0.0
    %1490 = vmatpush1.msra.mxu0 0.0
    %1491 = vmatprep.subr.mxu0 0.0
    %1492 = vmatpush1.msra.mxu0 0.0
    %1493 = vmatprep.subr.mxu0 0.0
    %1494 = vmatpush1.msra.mxu0 0.0
    %1495 = vmatprep.subr.mxu0 0.0
    %1496 = vmatpush1.msra.mxu0 0.0
    %1497 = vmatprep.subr.mxu0 0.0
    %1498 = vmatpush1.msra.mxu0 0.0
    %1499 = vmatprep.subr.mxu0 0.0
    %1500 = vmatpush1.msra.mxu0 0.0
    %1501 = vmatprep.subr.mxu0 0.0
    %1502 = vmatpush1.msra.mxu0 0.0
    %1503 = vmatprep.subr.mxu0 0.0
    %1504 = vmatpush1.msra.mxu0 0.0
    %1505 = vmatprep.subr.mxu0 0.0
    %1506 = vmatpush1.msra.mxu0 0.0
    %1507 = vmatprep.subr.mxu0 0.0
    %1508 = vmatpush1.msra.mxu0 0.0
    %1509 = vmatprep.subr.mxu0 0.0
    %1510 = vmatpush1.msra.mxu0 0.0
    %1511 = vmatprep.subr.mxu0 0.0
    %1512 = vmatpush1.msra.mxu0 0.0
    %1513 = vmatprep.subr.mxu0 0.0
    %1514 = vmatpush1.msra.mxu0 0.0
    %1515 = vmatprep.subr.mxu0 0.0
    %1516 = vmatpush1.msra.mxu0 0.0
    %1517 = vmatprep.subr.mxu0 0.0
    %1518 = vmatpush1.msra.mxu0 0.0
    %1519 = vmatprep.subr.mxu0 0.0
    %1520 = vmatpush1.msra.mxu0 0.0
    %1521 = vmatprep.subr.mxu0 0.0
    %1522 = vmatpush1.msra.mxu0 0.0
    %1523 = vmatprep.subr.mxu0 0.0
    %1524 = vmatpush1.msra.mxu0 0.0
    %1525 = vmatprep.mubr.f32.mxu0 0.0
    %1526 = vmatmul.mubr.f32.gmra.mrb[0].mxu0 %v1459
    %v1527 = vpop.f32.mrb[0].mxu0
    %v1528 = vadd.f32 0.0, %v1527
    %v1529 = vpop.f32.mrb[0].mxu0
    %1530 = vdwg.mxu0
    %1532 = vrot.lane.b32.xlu0 %v1528, 64
    %v1533 = vpop.permute.xlu0 %1532
    %v1535 = vadd.f32 %v294, %v1533
    %v1536 = vtanh.pop %v1535
    %v1537 = vmul.f32 %v1455, %v1373
    %v1538 = vsub.f32 1.0, %v1455
    %1540 = vrot.lane.b32.xlu0 %v1536, 96
    %v1541 = vpop.permute.xlu0 %1540
    %v1543 = vmul.f32 %v1538, %v1541
    %1545 = vrot.lane.b32.xlu0 %v662, 32
    %v1546 = vpop.permute.xlu0 %1545
    %v1548 = vmul.f32 %v1543, %v1546
    %v1549 = vadd.f32 %v1537, %v1548
    %1551 = vrot.lane.b32.xlu0 %v1549, 96
    %v1552 = vpop.permute.xlu0 %1551
    %v1553 = vsel %vm332, %v1552, 0
    %1555 = vmatprep.subr.mxu0 0.0
    %1556 = vmatpush1.msra.mxu0 %v151
    %1557 = vmatprep.subr.mxu0 0.0
    %1558 = vmatpush1.msra.mxu0 %v152
    %1559 = vmatprep.subr.mxu0 0.0
    %1560 = vmatpush1.msra.mxu0 %v153
    %1561 = vmatprep.subr.mxu0 0.0
    %1562 = vmatpush1.msra.mxu0 %v154
    %1563 = vmatprep.subr.mxu0 0.0
    %1564 = vmatpush1.msra.mxu0 0.0
    %1565 = vmatprep.subr.mxu0 0.0
    %1566 = vmatpush1.msra.mxu0 0.0
    %1567 = vmatprep.subr.mxu0 0.0
    %1568 = vmatpush1.msra.mxu0 0.0
    %1569 = vmatprep.subr.mxu0 0.0
    %1570 = vmatpush1.msra.mxu0 0.0
    %1571 = vmatprep.subr.mxu0 0.0
    %1572 = vmatpush1.msra.mxu0 0.0
    %1573 = vmatprep.subr.mxu0 0.0
    %1574 = vmatpush1.msra.mxu0 0.0
    %1575 = vmatprep.subr.mxu0 0.0
    %1576 = vmatpush1.msra.mxu0 0.0
    %1577 = vmatprep.subr.mxu0 0.0
    %1578 = vmatpush1.msra.mxu0 0.0
    %1579 = vmatprep.subr.mxu0 0.0
    %1580 = vmatpush1.msra.mxu0 0.0
    %1581 = vmatprep.subr.mxu0 0.0
    %1582 = vmatpush1.msra.mxu0 0.0
    %1583 = vmatprep.subr.mxu0 0.0
    %1584 = vmatpush1.msra.mxu0 0.0
    %1585 = vmatprep.subr.mxu0 0.0
    %1586 = vmatpush1.msra.mxu0 0.0
    %1587 = vmatprep.subr.mxu0 0.0
    %1588 = vmatpush1.msra.mxu0 0.0
    %1589 = vmatprep.subr.mxu0 0.0
    %1590 = vmatpush1.msra.mxu0 0.0
    %1591 = vmatprep.subr.mxu0 0.0
    %1592 = vmatpush1.msra.mxu0 0.0
    %1593 = vmatprep.subr.mxu0 0.0
    %1594 = vmatpush1.msra.mxu0 0.0
    %1595 = vmatprep.subr.mxu0 0.0
    %1596 = vmatpush1.msra.mxu0 0.0
    %1597 = vmatprep.subr.mxu0 0.0
    %1598 = vmatpush1.msra.mxu0 0.0
    %1599 = vmatprep.subr.mxu0 0.0
    %1600 = vmatpush1.msra.mxu0 0.0
    %1601 = vmatprep.subr.mxu0 0.0
    %1602 = vmatpush1.msra.mxu0 0.0
    %1603 = vmatprep.subr.mxu0 0.0
    %1604 = vmatpush1.msra.mxu0 0.0
    %1605 = vmatprep.subr.mxu0 0.0
    %1606 = vmatpush1.msra.mxu0 0.0
    %1607 = vmatprep.subr.mxu0 0.0
    %1608 = vmatpush1.msra.mxu0 0.0
    %1609 = vmatprep.subr.mxu0 0.0
    %1610 = vmatpush1.msra.mxu0 0.0
    %1611 = vmatprep.subr.mxu0 0.0
    %1612 = vmatpush1.msra.mxu0 0.0
    %1613 = vmatprep.subr.mxu0 0.0
    %1614 = vmatpush1.msra.mxu0 0.0
    %1615 = vmatprep.subr.mxu0 0.0
    %1616 = vmatpush1.msra.mxu0 0.0
    %1617 = vmatprep.subr.mxu0 0.0
    %1618 = vmatpush1.msra.mxu0 0.0
    %1619 = vmatprep.mubr.f32.mxu0 0.0
    %1620 = vmatmul.mubr.f32.gmra.mrb[0].mxu0 %v1553
    %v1621 = vpop.f32.mrb[0].mxu0
    %v1622 = vadd.f32 0.0, %v1621
    %v1623 = vpop.f32.mrb[0].mxu0
    %1624 = vdwg.mxu0
    %v1625 = vadd.f32 %v300, %v1622
    %v1626 = vxor.u32 %v1625, 2147483648
    %v1627 = vmul.f32 %v1626, 1.442695
    %v1628 = vpow.pop %v1627
    %v1629 = vadd.f32 %v1628, 1.0
    %v1630 = vrcp.pop %v1629
    %v1631 = vmul.f32 1.0, %v1630
    %v1633 = vmul.f32 %v1631, %v1552
    %v1635 = vsel %vm332, %v1633, 0
    %1637 = vmatprep.subr.mxu0 0.0
    %1638 = vmatpush1.msra.mxu0 %v155
    %1639 = vmatprep.subr.mxu0 0.0
    %1640 = vmatpush1.msra.mxu0 %v156
    %1641 = vmatprep.subr.mxu0 0.0
    %1642 = vmatpush1.msra.mxu0 %v157
    %1643 = vmatprep.subr.mxu0 0.0
    %1644 = vmatpush1.msra.mxu0 %v158
    %1645 = vmatprep.subr.mxu0 0.0
    %1646 = vmatpush1.msra.mxu0 0.0
    %1647 = vmatprep.subr.mxu0 0.0
    %1648 = vmatpush1.msra.mxu0 0.0
    %1649 = vmatprep.subr.mxu0 0.0
    %1650 = vmatpush1.msra.mxu0 0.0
    %1651 = vmatprep.subr.mxu0 0.0
    %1652 = vmatpush1.msra.mxu0 0.0
    %1653 = vmatprep.subr.mxu0 0.0
    %1654 = vmatpush1.msra.mxu0 0.0
    %1655 = vmatprep.subr.mxu0 0.0
    %1656 = vmatpush1.msra.mxu0 0.0
    %1657 = vmatprep.subr.mxu0 0.0
    %1658 = vmatpush1.msra.mxu0 0.0
    %1659 = vmatprep.subr.mxu0 0.0
    %1660 = vmatpush1.msra.mxu0 0.0
    %1661 = vmatprep.subr.mxu0 0.0
    %1662 = vmatpush1.msra.mxu0 0.0
    %1663 = vmatprep.subr.mxu0 0.0
    %1664 = vmatpush1.msra.mxu0 0.0
    %1665 = vmatprep.subr.mxu0 0.0
    %1666 = vmatpush1.msra.mxu0 0.0
    %1667 = vmatprep.subr.mxu0 0.0
    %1668 = vmatpush1.msra.mxu0 0.0
    %1669 = vmatprep.subr.mxu0 0.0
    %1670 = vmatpush1.msra.mxu0 0.0
    %1671 = vmatprep.subr.mxu0 0.0
    %1672 = vmatpush1.msra.mxu0 0.0
    %1673 = vmatprep.subr.mxu0 0.0
    %1674 = vmatpush1.msra.mxu0 0.0
    %1675 = vmatprep.subr.mxu0 0.0
    %1676 = vmatpush1.msra.mxu0 0.0
    %1677 = vmatprep.subr.mxu0 0.0
    %1678 = vmatpush1.msra.mxu0 0.0
    %1679 = vmatprep.subr.mxu0 0.0
    %1680 = vmatpush1.msra.mxu0 0.0
    %1681 = vmatprep.subr.mxu0 0.0
    %1682 = vmatpush1.msra.mxu0 0.0
    %1683 = vmatprep.subr.mxu0 0.0
    %1684 = vmatpush1.msra.mxu0 0.0
    %1685 = vmatprep.subr.mxu0 0.0
    %1686 = vmatpush1.msra.mxu0 0.0
    %1687 = vmatprep.subr.mxu0 0.0
    %1688 = vmatpush1.msra.mxu0 0.0
    %1689 = vmatprep.subr.mxu0 0.0
    %1690 = vmatpush1.msra.mxu0 0.0
    %1691 = vmatprep.subr.mxu0 0.0
    %1692 = vmatpush1.msra.mxu0 0.0
    %1693 = vmatprep.subr.mxu0 0.0
    %1694 = vmatpush1.msra.mxu0 0.0
    %1695 = vmatprep.subr.mxu0 0.0
    %1696 = vmatpush1.msra.mxu0 0.0
    %1697 = vmatprep.subr.mxu0 0.0
    %1698 = vmatpush1.msra.mxu0 0.0
    %1699 = vmatprep.subr.mxu0 0.0
    %1700 = vmatpush1.msra.mxu0 0.0
    %1701 = vmatprep.mubr.f32.mxu0 0.0
    %1702 = vmatmul.mubr.f32.gmra.mrb[0].mxu0 %v1635
    %v1703 = vpop.f32.mrb[0].mxu0
    %v1704 = vadd.f32 0.0, %v1703
    %v1705 = vpop.f32.mrb[0].mxu0
    %1706 = vdwg.mxu0
    %1708 = vrot.lane.b32.xlu0 %v1704, 64
    %v1709 = vpop.permute.xlu0 %1708
    %v1711 = vadd.f32 %v300, %v1709
    %v1712 = vtanh.pop %v1711
    %v1713 = vmul.f32 %v1631, %v1549
    %v1714 = vsub.f32 1.0, %v1631
    %1716 = vrot.lane.b32.xlu0 %v1712, 96
    %v1717 = vpop.permute.xlu0 %1716
    %v1719 = vmul.f32 %v1714, %v1717
    %1721 = vrot.lane.b32.xlu0 %v664, 32
    %v1722 = vpop.permute.xlu0 %1721
    %v1724 = vmul.f32 %v1719, %v1722
    %v1725 = vadd.f32 %v1713, %v1724
    %1727 = vrot.lane.b32.xlu0 %v1725, 96
    %v1728 = vpop.permute.xlu0 %1727
    %v1729 = vsel %vm332, %v1728, 0
    %1731 = vmatprep.subr.mxu0 0.0
    %1732 = vmatpush1.msra.mxu0 %v151
    %1733 = vmatprep.subr.mxu0 0.0
    %1734 = vmatpush1.msra.mxu0 %v152
    %1735 = vmatprep.subr.mxu0 0.0
    %1736 = vmatpush1.msra.mxu0 %v153
    %1737 = vmatprep.subr.mxu0 0.0
    %1738 = vmatpush1.msra.mxu0 %v154
    %1739 = vmatprep.subr.mxu0 0.0
    %1740 = vmatpush1.msra.mxu0 0.0
    %1741 = vmatprep.subr.mxu0 0.0
    %1742 = vmatpush1.msra.mxu0 0.0
    %1743 = vmatprep.subr.mxu0 0.0
    %1744 = vmatpush1.msra.mxu0 0.0
    %1745 = vmatprep.subr.mxu0 0.0
    %1746 = vmatpush1.msra.mxu0 0.0
    %1747 = vmatprep.subr.mxu0 0.0
    %1748 = vmatpush1.msra.mxu0 0.0
    %1749 = vmatprep.subr.mxu0 0.0
    %1750 = vmatpush1.msra.mxu0 0.0
    %1751 = vmatprep.subr.mxu0 0.0
    %1752 = vmatpush1.msra.mxu0 0.0
    %1753 = vmatprep.subr.mxu0 0.0
    %1754 = vmatpush1.msra.mxu0 0.0
    %1755 = vmatprep.subr.mxu0 0.0
    %1756 = vmatpush1.msra.mxu0 0.0
    %1757 = vmatprep.subr.mxu0 0.0
    %1758 = vmatpush1.msra.mxu0 0.0
    %1759 = vmatprep.subr.mxu0 0.0
    %1760 = vmatpush1.msra.mxu0 0.0
    %1761 = vmatprep.subr.mxu0 0.0
    %1762 = vmatpush1.msra.mxu0 0.0
    %1763 = vmatprep.subr.mxu0 0.0
    %1764 = vmatpush1.msra.mxu0 0.0
    %1765 = vmatprep.subr.mxu0 0.0
    %1766 = vmatpush1.msra.mxu0 0.0
    %1767 = vmatprep.subr.mxu0 0.0
    %1768 = vmatpush1.msra.mxu0 0.0
    %1769 = vmatprep.subr.mxu0 0.0
    %1770 = vmatpush1.msra.mxu0 0.0
    %1771 = vmatprep.subr.mxu0 0.0
    %1772 = vmatpush1.msra.mxu0 0.0
    %1773 = vmatprep.subr.mxu0 0.0
    %1774 = vmatpush1.msra.mxu0 0.0
    %1775 = vmatprep.subr.mxu0 0.0
    %1776 = vmatpush1.msra.mxu0 0.0
    %1777 = vmatprep.subr.mxu0 0.0
    %1778 = vmatpush1.msra.mxu0 0.0
    %1779 = vmatprep.subr.mxu0 0.0
    %1780 = vmatpush1.msra.mxu0 0.0
    %1781 = vmatprep.subr.mxu0 0.0
    %1782 = vmatpush1.msra.mxu0 0.0
    %1783 = vmatprep.subr.mxu0 0.0
    %1784 = vmatpush1.msra.mxu0 0.0
    %1785 = vmatprep.subr.mxu0 0.0
    %1786 = vmatpush1.msra.mxu0 0.0
    %1787 = vmatprep.subr.mxu0 0.0
    %1788 = vmatpush1.msra.mxu0 0.0
    %1789 = vmatprep.subr.mxu0 0.0
    %1790 = vmatpush1.msra.mxu0 0.0
    %1791 = vmatprep.subr.mxu0 0.0
    %1792 = vmatpush1.msra.mxu0 0.0
    %1793 = vmatprep.subr.mxu0 0.0
    %1794 = vmatpush1.msra.mxu0 0.0
    %1795 = vmatprep.mubr.f32.mxu0 0.0
    %1796 = vmatmul.mubr.f32.gmra.mrb[0].mxu0 %v1729
    %v1797 = vpop.f32.mrb[0].mxu0
    %v1798 = vadd.f32 0.0, %v1797
    %v1799 = vpop.f32.mrb[0].mxu0
    %1800 = vdwg.mxu0
    %v1801 = vadd.f32 %v306, %v1798
    %v1802 = vxor.u32 %v1801, 2147483648
    %v1803 = vmul.f32 %v1802, 1.442695
    %v1804 = vpow.pop %v1803
    %v1805 = vadd.f32 %v1804, 1.0
    %v1806 = vrcp.pop %v1805
    %v1807 = vmul.f32 1.0, %v1806
    %v1809 = vmul.f32 %v1807, %v1728
    %v1811 = vsel %vm332, %v1809, 0
    %1813 = vmatprep.subr.mxu0 0.0
    %1814 = vmatpush1.msra.mxu0 %v155
    %1815 = vmatprep.subr.mxu0 0.0
    %1816 = vmatpush1.msra.mxu0 %v156
    %1817 = vmatprep.subr.mxu0 0.0
    %1818 = vmatpush1.msra.mxu0 %v157
    %1819 = vmatprep.subr.mxu0 0.0
    %1820 = vmatpush1.msra.mxu0 %v158
    %1821 = vmatprep.subr.mxu0 0.0
    %1822 = vmatpush1.msra.mxu0 0.0
    %1823 = vmatprep.subr.mxu0 0.0
    %1824 = vmatpush1.msra.mxu0 0.0
    %1825 = vmatprep.subr.mxu0 0.0
    %1826 = vmatpush1.msra.mxu0 0.0
    %1827 = vmatprep.subr.mxu0 0.0
    %1828 = vmatpush1.msra.mxu0 0.0
    %1829 = vmatprep.subr.mxu0 0.0
    %1830 = vmatpush1.msra.mxu0 0.0
    %1831 = vmatprep.subr.mxu0 0.0
    %1832 = vmatpush1.msra.mxu0 0.0
    %1833 = vmatprep.subr.mxu0 0.0
    %1834 = vmatpush1.msra.mxu0 0.0
    %1835 = vmatprep.subr.mxu0 0.0
    %1836 = vmatpush1.msra.mxu0 0.0
    %1837 = vmatprep.subr.mxu0 0.0
    %1838 = vmatpush1.msra.mxu0 0.0
    %1839 = vmatprep.subr.mxu0 0.0
    %1840 = vmatpush1.msra.mxu0 0.0
    %1841 = vmatprep.subr.mxu0 0.0
    %1842 = vmatpush1.msra.mxu0 0.0
    %1843 = vmatprep.subr.mxu0 0.0
    %1844 = vmatpush1.msra.mxu0 0.0
    %1845 = vmatprep.subr.mxu0 0.0
    %1846 = vmatpush1.msra.mxu0 0.0
    %1847 = vmatprep.subr.mxu0 0.0
    %1848 = vmatpush1.msra.mxu0 0.0
    %1849 = vmatprep.subr.mxu0 0.0
    %1850 = vmatpush1.msra.mxu0 0.0
    %1851 = vmatprep.subr.mxu0 0.0
    %1852 = vmatpush1.msra.mxu0 0.0
    %1853 = vmatprep.subr.mxu0 0.0
    %1854 = vmatpush1.msra.mxu0 0.0
    %1855 = vmatprep.subr.mxu0 0.0
    %1856 = vmatpush1.msra.mxu0 0.0
    %1857 = vmatprep.subr.mxu0 0.0
    %1858 = vmatpush1.msra.mxu0 0.0
    %1859 = vmatprep.subr.mxu0 0.0
    %1860 = vmatpush1.msra.mxu0 0.0
    %1861 = vmatprep.subr.mxu0 0.0
    %1862 = vmatpush1.msra.mxu0 0.0
    %1863 = vmatprep.subr.mxu0 0.0
    %1864 = vmatpush1.msra.mxu0 0.0
    %1865 = vmatprep.subr.mxu0 0.0
    %1866 = vmatpush1.msra.mxu0 0.0
    %1867 = vmatprep.subr.mxu0 0.0
    %1868 = vmatpush1.msra.mxu0 0.0
    %1869 = vmatprep.subr.mxu0 0.0
    %1870 = vmatpush1.msra.mxu0 0.0
    %1871 = vmatprep.subr.mxu0 0.0
    %1872 = vmatpush1.msra.mxu0 0.0
    %1873 = vmatprep.subr.mxu0 0.0
    %1874 = vmatpush1.msra.mxu0 0.0
    %1875 = vmatprep.subr.mxu0 0.0
    %1876 = vmatpush1.msra.mxu0 0.0
    %1877 = vmatprep.mubr.f32.mxu0 0.0
    %1878 = vmatmul.mubr.f32.gmra.mrb[0].mxu0 %v1811
    %v1879 = vpop.f32.mrb[0].mxu0
    %v1880 = vadd.f32 0.0, %v1879
    %v1881 = vpop.f32.mrb[0].mxu0
    %1882 = vdwg.mxu0
    %1884 = vrot.lane.b32.xlu0 %v1880, 64
    %v1885 = vpop.permute.xlu0 %1884
    %v1887 = vadd.f32 %v306, %v1885
    %v1888 = vtanh.pop %v1887
    %v1889 = vmul.f32 %v1807, %v1725
    %v1890 = vsub.f32 1.0, %v1807
    %1892 = vrot.lane.b32.xlu0 %v1888, 96
    %v1893 = vpop.permute.xlu0 %1892
    %v1895 = vmul.f32 %v1890, %v1893
    %1897 = vrot.lane.b32.xlu0 %v666, 32
    %v1898 = vpop.permute.xlu0 %1897
    %v1900 = vmul.f32 %v1895, %v1898
    %v1901 = vadd.f32 %v1889, %v1900
    %1903 = vrot.lane.b32.xlu0 %v1901, 96
    %v1904 = vpop.permute.xlu0 %1903
    %v1905 = vsel %vm332, %v1904, 0
    %1907 = vmatprep.subr.mxu0 0.0
    %1908 = vmatpush1.msra.mxu0 %v151
    %1909 = vmatprep.subr.mxu0 0.0
    %1910 = vmatpush1.msra.mxu0 %v152
    %1911 = vmatprep.subr.mxu0 0.0
    %1912 = vmatpush1.msra.mxu0 %v153
    %1913 = vmatprep.subr.mxu0 0.0
    %1914 = vmatpush1.msra.mxu0 %v154
    %1915 = vmatprep.subr.mxu0 0.0
    %1916 = vmatpush1.msra.mxu0 0.0
    %1917 = vmatprep.subr.mxu0 0.0
    %1918 = vmatpush1.msra.mxu0 0.0
    %1919 = vmatprep.subr.mxu0 0.0
    %1920 = vmatpush1.msra.mxu0 0.0
    %1921 = vmatprep.subr.mxu0 0.0
    %1922 = vmatpush1.msra.mxu0 0.0
    %1923 = vmatprep.subr.mxu0 0.0
    %1924 = vmatpush1.msra.mxu0 0.0
    %1925 = vmatprep.subr.mxu0 0.0
    %1926 = vmatpush1.msra.mxu0 0.0
    %1927 = vmatprep.subr.mxu0 0.0
    %1928 = vmatpush1.msra.mxu0 0.0
    %1929 = vmatprep.subr.mxu0 0.0
    %1930 = vmatpush1.msra.mxu0 0.0
    %1931 = vmatprep.subr.mxu0 0.0
    %1932 = vmatpush1.msra.mxu0 0.0
    %1933 = vmatprep.subr.mxu0 0.0
    %1934 = vmatpush1.msra.mxu0 0.0
    %1935 = vmatprep.subr.mxu0 0.0
    %1936 = vmatpush1.msra.mxu0 0.0
    %1937 = vmatprep.subr.mxu0 0.0
    %1938 = vmatpush1.msra.mxu0 0.0
    %1939 = vmatprep.subr.mxu0 0.0
    %1940 = vmatpush1.msra.mxu0 0.0
    %1941 = vmatprep.subr.mxu0 0.0
    %1942 = vmatpush1.msra.mxu0 0.0
    %1943 = vmatprep.subr.mxu0 0.0
    %1944 = vmatpush1.msra.mxu0 0.0
    %1945 = vmatprep.subr.mxu0 0.0
    %1946 = vmatpush1.msra.mxu0 0.0
    %1947 = vmatprep.subr.mxu0 0.0
    %1948 = vmatpush1.msra.mxu0 0.0
    %1949 = vmatprep.subr.mxu0 0.0
    %1950 = vmatpush1.msra.mxu0 0.0
    %1951 = vmatprep.subr.mxu0 0.0
    %1952 = vmatpush1.msra.mxu0 0.0
    %1953 = vmatprep.subr.mxu0 0.0
    %1954 = vmatpush1.msra.mxu0 0.0
    %1955 = vmatprep.subr.mxu0 0.0
    %1956 = vmatpush1.msra.mxu0 0.0
    %1957 = vmatprep.subr.mxu0 0.0
    %1958 = vmatpush1.msra.mxu0 0.0
    %1959 = vmatprep.subr.mxu0 0.0
    %1960 = vmatpush1.msra.mxu0 0.0
    %1961 = vmatprep.subr.mxu0 0.0
    %1962 = vmatpush1.msra.mxu0 0.0
    %1963 = vmatprep.subr.mxu0 0.0
    %1964 = vmatpush1.msra.mxu0 0.0
    %1965 = vmatprep.subr.mxu0 0.0
    %1966 = vmatpush1.msra.mxu0 0.0
    %1967 = vmatprep.subr.mxu0 0.0
    %1968 = vmatpush1.msra.mxu0 0.0
    %1969 = vmatprep.subr.mxu0 0.0
    %1970 = vmatpush1.msra.mxu0 0.0
    %1971 = vmatprep.mubr.f32.mxu0 0.0
    %1972 = vmatmul.mubr.f32.gmra.mrb[0].mxu0 %v1905
    %v1973 = vpop.f32.mrb[0].mxu0
    %v1974 = vadd.f32 0.0, %v1973
    %v1975 = vpop.f32.mrb[0].mxu0
    %1976 = vdwg.mxu0
    %v1977 = vadd.f32 %v312, %v1974
    %v1978 = vxor.u32 %v1977, 2147483648
    %v1979 = vmul.f32 %v1978, 1.442695
    %v1980 = vpow.pop %v1979
    %v1981 = vadd.f32 %v1980, 1.0
    %v1982 = vrcp.pop %v1981
    %v1983 = vmul.f32 1.0, %v1982
    %v1985 = vmul.f32 %v1983, %v1904
    %v1987 = vsel %vm332, %v1985, 0
    %1989 = vmatprep.subr.mxu0 0.0
    %1990 = vmatpush1.msra.mxu0 %v155
    %1991 = vmatprep.subr.mxu0 0.0
    %1992 = vmatpush1.msra.mxu0 %v156
    %1993 = vmatprep.subr.mxu0 0.0
    %1994 = vmatpush1.msra.mxu0 %v157
    %1995 = vmatprep.subr.mxu0 0.0
    %1996 = vmatpush1.msra.mxu0 %v158
    %1997 = vmatprep.subr.mxu0 0.0
    %1998 = vmatpush1.msra.mxu0 0.0
    %1999 = vmatprep.subr.mxu0 0.0
    %2000 = vmatpush1.msra.mxu0 0.0
    %2001 = vmatprep.subr.mxu0 0.0
    %2002 = vmatpush1.msra.mxu0 0.0
    %2003 = vmatprep.subr.mxu0 0.0
    %2004 = vmatpush1.msra.mxu0 0.0
    %2005 = vmatprep.subr.mxu0 0.0
    %2006 = vmatpush1.msra.mxu0 0.0
    %2007 = vmatprep.subr.mxu0 0.0
    %2008 = vmatpush1.msra.mxu0 0.0
    %2009 = vmatprep.subr.mxu0 0.0
    %2010 = vmatpush1.msra.mxu0 0.0
    %2011 = vmatprep.subr.mxu0 0.0
    %2012 = vmatpush1.msra.mxu0 0.0
    %2013 = vmatprep.subr.mxu0 0.0
    %2014 = vmatpush1.msra.mxu0 0.0
    %2015 = vmatprep.subr.mxu0 0.0
    %2016 = vmatpush1.msra.mxu0 0.0
    %2017 = vmatprep.subr.mxu0 0.0
    %2018 = vmatpush1.msra.mxu0 0.0
    %2019 = vmatprep.subr.mxu0 0.0
    %2020 = vmatpush1.msra.mxu0 0.0
    %2021 = vmatprep.subr.mxu0 0.0
    %2022 = vmatpush1.msra.mxu0 0.0
    %2023 = vmatprep.subr.mxu0 0.0
    %2024 = vmatpush1.msra.mxu0 0.0
    %2025 = vmatprep.subr.mxu0 0.0
    %2026 = vmatpush1.msra.mxu0 0.0
    %2027 = vmatprep.subr.mxu0 0.0
    %2028 = vmatpush1.msra.mxu0 0.0
    %2029 = vmatprep.subr.mxu0 0.0
    %2030 = vmatpush1.msra.mxu0 0.0
    %2031 = vmatprep.subr.mxu0 0.0
    %2032 = vmatpush1.msra.mxu0 0.0
    %2033 = vmatprep.subr.mxu0 0.0
    %2034 = vmatpush1.msra.mxu0 0.0
    %2035 = vmatprep.subr.mxu0 0.0
    %2036 = vmatpush1.msra.mxu0 0.0
    %2037 = vmatprep.subr.mxu0 0.0
    %2038 = vmatpush1.msra.mxu0 0.0
    %2039 = vmatprep.subr.mxu0 0.0
    %2040 = vmatpush1.msra.mxu0 0.0
    %2041 = vmatprep.subr.mxu0 0.0
    %2042 = vmatpush1.msra.mxu0 0.0
    %2043 = vmatprep.subr.mxu0 0.0
    %2044 = vmatpush1.msra.mxu0 0.0
    %2045 = vmatprep.subr.mxu0 0.0
    %2046 = vmatpush1.msra.mxu0 0.0
    %2047 = vmatprep.subr.mxu0 0.0
    %2048 = vmatpush1.msra.mxu0 0.0
    %2049 = vmatprep.subr.mxu0 0.0
    %2050 = vmatpush1.msra.mxu0 0.0
    %2051 = vmatprep.subr.mxu0 0.0
    %2052 = vmatpush1.msra.mxu0 0.0
    %2053 = vmatprep.mubr.f32.mxu0 0.0
    %2054 = vmatmul.mubr.f32.gmra.mrb[0].mxu0 %v1987
    %v2055 = vpop.f32.mrb[0].mxu0
    %v2056 = vadd.f32 0.0, %v2055
    %v2057 = vpop.f32.mrb[0].mxu0
    %2058 = vdwg.mxu0
    %2060 = vrot.lane.b32.xlu0 %v2056, 64
    %v2061 = vpop.permute.xlu0 %2060
    %v2063 = vadd.f32 %v312, %v2061
    %v2064 = vtanh.pop %v2063
    %v2065 = vmul.f32 %v1983, %v1901
    %v2066 = vsub.f32 1.0, %v1983
    %2068 = vrot.lane.b32.xlu0 %v2064, 96
    %v2069 = vpop.permute.xlu0 %2068
    %v2071 = vmul.f32 %v2066, %v2069
    %2073 = vrot.lane.b32.xlu0 %v668, 32
    %v2074 = vpop.permute.xlu0 %2073
    %v2076 = vmul.f32 %v2071, %v2074
    %v2077 = vadd.f32 %v2065, %v2076
    %2079 = vrot.lane.b32.xlu0 %v2077, 96
    %v2080 = vpop.permute.xlu0 %2079
    %2082 = vst.msk [vmem:[#allocation2] sm:$0xff] %vm332, %v2080
    %2083 = vrot.lane.b32.xlu0 %v1197, 32
    %v2084 = vpop.permute.xlu0 %2083
    %2086 = vrot.lane.b32.xlu0 %v1373, 64
    %v2087 = vpop.permute.xlu0 %2086
    %2089 = vrot.lane.b32.xlu0 %v1901, 32
    %v2090 = vpop.permute.xlu0 %2089
    %2092 = vrot.lane.b32.xlu0 %v2077, 64
    %v2093 = vpop.permute.xlu0 %2092
    %v2095 = vsel %vm332, %v848, %v1021
    %v2096 = vsel %vm178, %v2095, %v2084
    %vm2097 = vcmask 785408
    %v2098 = vsel %vm2097, %v2096, %v2087
    %v2099 = vsel %vm332, %v1552, %v1725
    %v2100 = vsel %vm178, %v2099, %v2090
    %v2101 = vsel %vm2097, %v2100, %v2093
    %2102 = vst [vmem:[#allocation14] sm:$0xff] %v2098
    %2103 = vst [vmem:[#allocation14 + $0x8] sm:$0xff] %v2101
    // Predicated region
    $region66: #{tpu_custom_call.1} parent=1 // pred_check
      %p2104 = pneg %p118
    $region67: #{tpu_custom_call.1} parent=1 // pred_check_branch
      %2106 = sbr.rel (%p2104) target = $region69
    $region68: #{tpu_custom_call.1} parent=1 // pred_region
      %2107 = vst.msk [vmem:[#allocation15] sm:$0xff] %vm332, %v2080
    $region69: #{tpu_custom_call.1} parent=1 // pred_fallthru
      _
    // Predicated region
    $region70: #{tpu_custom_call.1} parent=1 // pred_check
      _
    $region71: #{tpu_custom_call.1} parent=1 // pred_check_branch
      %2109 = sbr.rel (0) target = $region73
    $region72: #{tpu_custom_call.1} parent=1 // pred_region
      %s2111 = ssub.s32 256, 256
      %2112 = vsyncadd [#allocation5], %s2111
      %s2114 = sshll.u32 [#allocation14], 4
      %s2115 = int_to_ptr.vmem [resolvable:$true] %s2114
      %2117 = dma.vmem_to_hbm [thread:$0]  %s2115, 256, %s9, [#allocation5]
    $region73: #{tpu_custom_call.1} parent=1 // pred_fallthru
      _
    // Predicated region
    $region74: #{tpu_custom_call.1} parent=1 // pred_check
      _
    $region75: #{tpu_custom_call.1} parent=1 // pred_check_branch
      %2119 = sbr.rel (0) target = $region77
    $region76: #{tpu_custom_call.1} parent=1 // pred_region
      %s2121 = ssub.s32 128, 128
      %2122 = vsyncadd [#allocation16], %s2121
      %s2124 = sshll.u32 [#allocation15], 4
      %s2125 = int_to_ptr.vmem [resolvable:$true] %s2124
      %2127 = dma.vmem_to_hbm [thread:$0]  %s2125, 128, %s10, [#allocation16]
    $region77: #{tpu_custom_call.1} parent=1 // pred_fallthru
      _
    // Predicated region
    $region78: #{tpu_custom_call.1} parent=1 // pred_check
      _
    $region79: #{tpu_custom_call.1} parent=1 // pred_check_branch
      %2129 = sbr.rel (0) target = $region81
    $region80: #{tpu_custom_call.1} parent=1 // pred_region
      %2130 = dma.done [#allocation5], 256
    $region81: #{tpu_custom_call.1} parent=1 // pred_fallthru
      _
    // Predicated region
    $region82: #{tpu_custom_call.1} parent=1 // pred_check
      _
    $region83: #{tpu_custom_call.1} parent=1 // pred_check_branch
      %2132 = sbr.rel (0) target = $region85
    $region84: #{tpu_custom_call.1} parent=1 // pred_region
      %2133 = dma.done [#allocation16], 128
    $region85: #{tpu_custom_call.1} parent=1 // pred_fallthru
      _
    %2134 = vsyncpa [#allocation4], 1
    %2135 = vsyncpa [#allocation7], 1
    %2136 = vsyncpa [#allocation10], 1
    %2137 = vsyncpa [#allocation13], 1
    %2138 = vsyncpa [#allocation5], 1
    %2139 = vsyncpa [#allocation16], 1

</llo_original>
